<compile_context>
chip_gen: v6e
topology: v6e:2x2x1
jax: 0.10.0
libtpu: 0.0.40
codegen_flags: <defaults>
</compile_context>

<pallas_src>
import functools

import jax
import jax.numpy as jnp
from jax.experimental import pallas as pl
from jax.experimental.pallas import tpu as pltpu


# ---------------------------------------------------------------------------
# Fused MHA kernel: one grid step == one batch element, all heads at once.
#   q_ref    : (1, Sq, E)       k_ref/v_ref : (1, Sk, E)
#   wqkv_ref : (3, E, E)        bqkv_ref    : (3, 1, E)     [q | k | v]
#   wo_ref   : (E, E)           bo_ref      : (1, E)
#   out_ref  : (1, Sq, E)
#   attn_refs: optionally one ref of shape (1, H, Sq, Sk)
# ---------------------------------------------------------------------------
def _mha_fused_kernel(q_ref, k_ref, v_ref, wqkv_ref, bqkv_ref, wo_ref, bo_ref,
                      out_ref, *attn_refs, num_heads, head_dim, seq_q, seq_k):
    # ---- QKV projections: three small lane-dense MXU matmuls, f32 accumulate ----
    q2d = jnp.dot(q_ref[0], wqkv_ref[0],
                  preferred_element_type=jnp.float32) + bqkv_ref[0]   # (Sq, E)
    k2d = jnp.dot(k_ref[0], wqkv_ref[1],
                  preferred_element_type=jnp.float32) + bqkv_ref[1]   # (Sk, E)
    v2d = jnp.dot(v_ref[0], wqkv_ref[2],
                  preferred_element_type=jnp.float32) + bqkv_ref[2]   # (Sk, E)

    # ---- Split heads: (S, E) -> (H, S, D) with static lane slices + concat ----
    def split_heads(x2d, s):
        return jnp.concatenate(
            [x2d[:, h * head_dim:(h + 1) * head_dim].reshape(1, s, head_dim)
             for h in range(num_heads)],
            axis=0)

    q = split_heads(q2d, seq_q)                                 # (H, Sq, D)
    k = split_heads(k2d, seq_k)                                 # (H, Sk, D)
    v = split_heads(v2d, seq_k)                                 # (H, Sk, D)

    # ---- Scores over all heads; contraction on the last dim (no explicit k.T) ----
    scale = 1.0 / (head_dim ** 0.5)
    scores = jnp.einsum("hqd,hkd->hqk", q, k,
                        preferred_element_type=jnp.float32) * scale   # (H, Sq, Sk)

    # ---- Numerically-stable softmax over the key axis for all heads at once ----
    m = jnp.max(scores, axis=-1, keepdims=True)
    e = jnp.exp(scores - m)
    denom = jnp.sum(e, axis=-1, keepdims=True)
    # approx=False keeps attn/out within 1e-5 of the reference; flip to
    # approx=True (EUP vrcp) if bit-tight attention weights are not required.
    attn = e * pl.reciprocal(denom, approx=False)               # (H, Sq, Sk)

    # ---- Context and output projection ----
    ctx = jnp.einsum("hqk,hkd->hqd", attn, v,
                     preferred_element_type=jnp.float32)        # (H, Sq, D)
    ctx2d = jnp.concatenate([ctx[h] for h in range(num_heads)], axis=1)  # (Sq, E)

    out = jnp.dot(ctx2d, wo_ref[...], preferred_element_type=jnp.float32) + bo_ref[...]
    out_ref[0] = out.astype(out_ref.dtype)

    if attn_refs:                                               # optional lane-sparse output
        attn_refs[0][0] = attn.astype(attn_refs[0].dtype)


# ---------------------------------------------------------------------------
# Module wrapper
# ---------------------------------------------------------------------------
class MultiHeadAttentionPallas:
    def __init__(self, embed_dim, num_heads, key):
        assert embed_dim % num_heads == 0
        self.embed_dim = embed_dim
        self.num_heads = num_heads
        self.head_dim = embed_dim // num_heads

        keys = jax.random.split(key, 8)
        init = lambda k, shape: (0.02 * jax.random.normal(k, shape)).astype(jnp.float32)
        # Weights stored as (in, out) == W^T of torch.nn.Linear.
        self.w_q = init(keys[0], (embed_dim, embed_dim))
        self.b_q = init(keys[1], (1, embed_dim))
        self.w_k = init(keys[2], (embed_dim, embed_dim))
        self.b_k = init(keys[3], (1, embed_dim))
        self.w_v = init(keys[4], (embed_dim, embed_dim))
        self.b_v = init(keys[5], (1, embed_dim))
        self.w_o = init(keys[6], (embed_dim, embed_dim))
        self.b_o = init(keys[7], (1, embed_dim))

        # Stacked QKV weight/bias used by the fused kernel (leading axis indexed
        # for free inside the kernel; built once at construction time).
        self.w_qkv = jnp.stack([self.w_q, self.w_k, self.w_v], axis=0)   # (3, E, E)
        self.b_qkv = jnp.stack([self.b_q, self.b_k, self.b_v], axis=0)   # (3, 1, E)

    def __call__(self, query, key, value, need_weights=True):
        # query: (B, Sq, E); key/value: (B, Sk, E)
        B, Sq, E = query.shape
        Sk = key.shape[1]
        H, D = self.num_heads, self.head_dim

        kernel = functools.partial(
            _mha_fused_kernel,
            num_heads=H, head_dim=D, seq_q=Sq, seq_k=Sk)

        in_specs = [
            pl.BlockSpec((1, Sq, E), lambda b: (b, 0, 0)),
            pl.BlockSpec((1, Sk, E), lambda b: (b, 0, 0)),
            pl.BlockSpec((1, Sk, E), lambda b: (b, 0, 0)),
            pl.BlockSpec((3, E, E), lambda b: (0, 0, 0)),
            pl.BlockSpec((3, 1, E), lambda b: (0, 0, 0)),
            pl.BlockSpec((E, E), lambda b: (0, 0)),
            pl.BlockSpec((1, E), lambda b: (0, 0)),
        ]

        if need_weights:
            out_shape = (
                jax.ShapeDtypeStruct((B, Sq, E), jnp.float32),
                jax.ShapeDtypeStruct((B, H, Sq, Sk), jnp.float32),
            )
            out_specs = (
                pl.BlockSpec((1, Sq, E), lambda b: (b, 0, 0)),
                pl.BlockSpec((1, H, Sq, Sk), lambda b: (b, 0, 0, 0)),
            )
        else:
            out_shape = jax.ShapeDtypeStruct((B, Sq, E), jnp.float32)
            out_specs = pl.BlockSpec((1, Sq, E), lambda b: (b, 0, 0))

        result = pl.pallas_call(
            kernel,
            out_shape=out_shape,
            grid_spec=pltpu.PrefetchScalarGridSpec(
                num_scalar_prefetch=0,
                grid=(B,),                      # parallel over batch -> v7x 2-TC friendly
                in_specs=in_specs,
                out_specs=out_specs,
            ),
            compiler_params=pltpu.CompilerParams(
                dimension_semantics=("parallel",)),
        )(query, key, value, self.w_qkv, self.b_qkv, self.w_o, self.b_o)

        if need_weights:
            out, attn = result
            return out, attn
        return result, None


# ---------------------------------------------------------------------------
# Pure-JAX reference (mirrors the PyTorch forward, eval mode)
# ---------------------------------------------------------------------------
def reference_mha(mha, query, key, value):
    B, Sq, E = query.shape
    Sk = key.shape[1]
    H, D = mha.num_heads, mha.head_dim
    q = query @ mha.w_q + mha.b_q
    k = key @ mha.w_k + mha.b_k
    v = value @ mha.w_v + mha.b_v
    q = q.reshape(B, Sq, H, D).transpose(0, 2, 1, 3)
    k = k.reshape(B, Sk, H, D).transpose(0, 2, 1, 3)
    v = v.reshape(B, Sk, H, D).transpose(0, 2, 1, 3)
    scores = jnp.einsum("bhqd,bhkd->bhqk", q, k) / (D ** 0.5)
    attn = jax.nn.softmax(scores, axis=-1)
    out = jnp.einsum("bhqk,bhkd->bhqd", attn, v)
    out = out.transpose(0, 2, 1, 3).reshape(B, Sq, E)
    out = out @ mha.w_o + mha.b_o
    return out, attn


if __name__ == "__main__":
    key = jax.random.PRNGKey(0)
    k_params, k_q, k_k, k_v = jax.random.split(key, 4)

    B, S, E, H = 2, 8, 32, 4
    mha = MultiHeadAttentionPallas(E, H, k_params)

    query = jax.random.normal(k_q, (B, S, E), dtype=jnp.float32)
    key_in = jax.random.normal(k_k, (B, S, E), dtype=jnp.float32)
    value = jax.random.normal(k_v, (B, S, E), dtype=jnp.float32)

    out, attn = mha(query, key_in, value, need_weights=True)
    out = jax.block_until_ready(out)
    attn = jax.block_until_ready(attn)

    ref_out, ref_attn = reference_mha(mha, query, key_in, value)
    assert jnp.allclose(out, ref_out, atol=1e-5, rtol=1e-5), "output mismatch"
    assert jnp.allclose(attn, ref_attn, atol=1e-5, rtol=1e-5), "attn mismatch"

    # Fast path without the lane-sparse attention-weights writeback.
    out_nw, _ = mha(query, key_in, value, need_weights=False)
    out_nw = jax.block_until_ready(out_nw)
    assert jnp.allclose(out_nw, ref_out, atol=1e-5, rtol=1e-5), "no-weights output mismatch"

    print("KERNEL_OK")
</pallas_src>

<mosaic_0001>
module attributes {stable_mosaic.version = 11 : i64} {
  func.func @_mha_fused_kernel(%arg0: i32, %arg1: memref<1x8x32xf32, #tpu.memory_space<vmem>>, %arg2: memref<1x8x32xf32, #tpu.memory_space<vmem>>, %arg3: memref<1x8x32xf32, #tpu.memory_space<vmem>>, %arg4: memref<3x32x32xf32, #tpu.memory_space<vmem>>, %arg5: memref<3x1x32xf32, #tpu.memory_space<vmem>>, %arg6: memref<32x32xf32, #tpu.memory_space<vmem>>, %arg7: memref<1x32xf32, #tpu.memory_space<vmem>>, %arg8: memref<1x8x32xf32, #tpu.memory_space<vmem>>, %arg9: memref<1x4x8x8xf32, #tpu.memory_space<vmem>>) attributes {dimension_semantics = [#tpu.dimension_semantics<parallel>], iteration_bounds = array<i64: 2>, scalar_prefetch = 0 : i64, scratch_operands = 0 : i64, tpu.core_type = #tpu.core_type<tc>, window_params = [{transform_indices = @transform_0, window_bounds = array<i64: 1, 8, 32>}, {transform_indices = @transform_1, window_bounds = array<i64: 1, 8, 32>}, {transform_indices = @transform_2, window_bounds = array<i64: 1, 8, 32>}, {pipeline_mode = #tpu.pipeline_mode<synchronous>, transform_indices = @transform_3, window_bounds = array<i64: 3, 32, 32>}, {pipeline_mode = #tpu.pipeline_mode<synchronous>, transform_indices = @transform_4, window_bounds = array<i64: 3, 1, 32>}, {pipeline_mode = #tpu.pipeline_mode<synchronous>, transform_indices = @transform_5, window_bounds = array<i64: 32, 32>}, {pipeline_mode = #tpu.pipeline_mode<synchronous>, transform_indices = @transform_6, window_bounds = array<i64: 1, 32>}, {transform_indices = @transform_7, window_bounds = array<i64: 1, 8, 32>}, {transform_indices = @transform_8, window_bounds = array<i64: 1, 4, 8, 8>}]} {
    %c0 = arith.constant 0 : index
    %c0_0 = arith.constant 0 : index
    %c0_1 = arith.constant 0 : index
    %0 = vector.load %arg1[%c0, %c0_0, %c0_1] : memref<1x8x32xf32, #tpu.memory_space<vmem>>, vector<1x8x32xf32>
    %1 = vector.shape_cast %0 : vector<1x8x32xf32> to vector<8x32xf32>
    %c0_2 = arith.constant 0 : index
    %c0_3 = arith.constant 0 : index
    %c0_4 = arith.constant 0 : index
    %2 = vector.load %arg4[%c0_2, %c0_3, %c0_4] : memref<3x32x32xf32, #tpu.memory_space<vmem>>, vector<1x32x32xf32>
    %3 = vector.shape_cast %2 : vector<1x32x32xf32> to vector<32x32xf32>
    %cst = arith.constant dense<0.000000e+00> : vector<8x32xf32>
    %4 = tpu.matmul %1, %3, %cst {dimension_numbers = #tpu.dot_dimension_numbers<[1], [0], [0], [1], [0, 0, 1, 1], [], []>} : vector<8x32xf32>, vector<32x32xf32>, vector<8x32xf32> -> vector<8x32xf32>
    %c0_5 = arith.constant 0 : index
    %c0_6 = arith.constant 0 : index
    %c0_7 = arith.constant 0 : index
    %5 = vector.load %arg5[%c0_5, %c0_6, %c0_7] : memref<3x1x32xf32, #tpu.memory_space<vmem>>, vector<1x1x32xf32>
    %6 = vector.shape_cast %5 : vector<1x1x32xf32> to vector<1x32xf32>
    %7 = vector.broadcast %6 : vector<1x32xf32> to vector<8x32xf32>
    %8 = arith.addf %4, %7 : vector<8x32xf32>
    %c0_8 = arith.constant 0 : index
    %c0_9 = arith.constant 0 : index
    %c0_10 = arith.constant 0 : index
    %9 = vector.load %arg2[%c0_8, %c0_9, %c0_10] : memref<1x8x32xf32, #tpu.memory_space<vmem>>, vector<1x8x32xf32>
    %10 = vector.shape_cast %9 : vector<1x8x32xf32> to vector<8x32xf32>
    %c1 = arith.constant 1 : index
    %c0_11 = arith.constant 0 : index
    %c0_12 = arith.constant 0 : index
    %11 = vector.load %arg4[%c1, %c0_11, %c0_12] : memref<3x32x32xf32, #tpu.memory_space<vmem>>, vector<1x32x32xf32>
    %12 = vector.shape_cast %11 : vector<1x32x32xf32> to vector<32x32xf32>
    %cst_13 = arith.constant dense<0.000000e+00> : vector<8x32xf32>
    %13 = tpu.matmul %10, %12, %cst_13 {dimension_numbers = #tpu.dot_dimension_numbers<[1], [0], [0], [1], [0, 0, 1, 1], [], []>} : vector<8x32xf32>, vector<32x32xf32>, vector<8x32xf32> -> vector<8x32xf32>
    %c1_14 = arith.constant 1 : index
    %c0_15 = arith.constant 0 : index
    %c0_16 = arith.constant 0 : index
    %14 = vector.load %arg5[%c1_14, %c0_15, %c0_16] : memref<3x1x32xf32, #tpu.memory_space<vmem>>, vector<1x1x32xf32>
    %15 = vector.shape_cast %14 : vector<1x1x32xf32> to vector<1x32xf32>
    %16 = vector.broadcast %15 : vector<1x32xf32> to vector<8x32xf32>
    %17 = arith.addf %13, %16 : vector<8x32xf32>
    %c0_17 = arith.constant 0 : index
    %c0_18 = arith.constant 0 : index
    %c0_19 = arith.constant 0 : index
    %18 = vector.load %arg3[%c0_17, %c0_18, %c0_19] : memref<1x8x32xf32, #tpu.memory_space<vmem>>, vector<1x8x32xf32>
    %19 = vector.shape_cast %18 : vector<1x8x32xf32> to vector<8x32xf32>
    %c2 = arith.constant 2 : index
    %c0_20 = arith.constant 0 : index
    %c0_21 = arith.constant 0 : index
    %20 = vector.load %arg4[%c2, %c0_20, %c0_21] : memref<3x32x32xf32, #tpu.memory_space<vmem>>, vector<1x32x32xf32>
    %21 = vector.shape_cast %20 : vector<1x32x32xf32> to vector<32x32xf32>
    %cst_22 = arith.constant dense<0.000000e+00> : vector<8x32xf32>
    %22 = tpu.matmul %19, %21, %cst_22 {dimension_numbers = #tpu.dot_dimension_numbers<[1], [0], [0], [1], [0, 0, 1, 1], [], []>} : vector<8x32xf32>, vector<32x32xf32>, vector<8x32xf32> -> vector<8x32xf32>
    %c2_23 = arith.constant 2 : index
    %c0_24 = arith.constant 0 : index
    %c0_25 = arith.constant 0 : index
    %23 = vector.load %arg5[%c2_23, %c0_24, %c0_25] : memref<3x1x32xf32, #tpu.memory_space<vmem>>, vector<1x1x32xf32>
    %24 = vector.shape_cast %23 : vector<1x1x32xf32> to vector<1x32xf32>
    %25 = vector.broadcast %24 : vector<1x32xf32> to vector<8x32xf32>
    %26 = arith.addf %22, %25 : vector<8x32xf32>
    %27 = vector.extract_strided_slice %8 {offsets = [0, 0], sizes = [8, 8], strides = [1, 1]} : vector<8x32xf32> to vector<8x8xf32>
    %28 = vector.shape_cast %27 : vector<8x8xf32> to vector<1x8x8xf32>
    %29 = vector.extract_strided_slice %8 {offsets = [0, 8], sizes = [8, 8], strides = [1, 1]} : vector<8x32xf32> to vector<8x8xf32>
    %30 = vector.shape_cast %29 : vector<8x8xf32> to vector<1x8x8xf32>
    %31 = vector.extract_strided_slice %8 {offsets = [0, 16], sizes = [8, 8], strides = [1, 1]} : vector<8x32xf32> to vector<8x8xf32>
    %32 = vector.shape_cast %31 : vector<8x8xf32> to vector<1x8x8xf32>
    %33 = vector.extract_strided_slice %8 {offsets = [0, 24], sizes = [8, 8], strides = [1, 1]} : vector<8x32xf32> to vector<8x8xf32>
    %34 = vector.shape_cast %33 : vector<8x8xf32> to vector<1x8x8xf32>
    %35 = tpu.concatenate %28, %30, %32, %34 in 0 : vector<1x8x8xf32>, vector<1x8x8xf32>, vector<1x8x8xf32>, vector<1x8x8xf32> -> vector<4x8x8xf32>
    %36 = vector.extract_strided_slice %17 {offsets = [0, 0], sizes = [8, 8], strides = [1, 1]} : vector<8x32xf32> to vector<8x8xf32>
    %37 = vector.shape_cast %36 : vector<8x8xf32> to vector<1x8x8xf32>
    %38 = vector.extract_strided_slice %17 {offsets = [0, 8], sizes = [8, 8], strides = [1, 1]} : vector<8x32xf32> to vector<8x8xf32>
    %39 = vector.shape_cast %38 : vector<8x8xf32> to vector<1x8x8xf32>
    %40 = vector.extract_strided_slice %17 {offsets = [0, 16], sizes = [8, 8], strides = [1, 1]} : vector<8x32xf32> to vector<8x8xf32>
    %41 = vector.shape_cast %40 : vector<8x8xf32> to vector<1x8x8xf32>
    %42 = vector.extract_strided_slice %17 {offsets = [0, 24], sizes = [8, 8], strides = [1, 1]} : vector<8x32xf32> to vector<8x8xf32>
    %43 = vector.shape_cast %42 : vector<8x8xf32> to vector<1x8x8xf32>
    %44 = tpu.concatenate %37, %39, %41, %43 in 0 : vector<1x8x8xf32>, vector<1x8x8xf32>, vector<1x8x8xf32>, vector<1x8x8xf32> -> vector<4x8x8xf32>
    %45 = vector.extract_strided_slice %26 {offsets = [0, 0], sizes = [8, 8], strides = [1, 1]} : vector<8x32xf32> to vector<8x8xf32>
    %46 = vector.shape_cast %45 : vector<8x8xf32> to vector<1x8x8xf32>
    %47 = vector.extract_strided_slice %26 {offsets = [0, 8], sizes = [8, 8], strides = [1, 1]} : vector<8x32xf32> to vector<8x8xf32>
    %48 = vector.shape_cast %47 : vector<8x8xf32> to vector<1x8x8xf32>
    %49 = vector.extract_strided_slice %26 {offsets = [0, 16], sizes = [8, 8], strides = [1, 1]} : vector<8x32xf32> to vector<8x8xf32>
    %50 = vector.shape_cast %49 : vector<8x8xf32> to vector<1x8x8xf32>
    %51 = vector.extract_strided_slice %26 {offsets = [0, 24], sizes = [8, 8], strides = [1, 1]} : vector<8x32xf32> to vector<8x8xf32>
    %52 = vector.shape_cast %51 : vector<8x8xf32> to vector<1x8x8xf32>
    %53 = tpu.concatenate %46, %48, %50, %52 in 0 : vector<1x8x8xf32>, vector<1x8x8xf32>, vector<1x8x8xf32>, vector<1x8x8xf32> -> vector<4x8x8xf32>
    "tpu.trace_start"() <{level = 10 : i32, message = "hqd,hkd->hqk"}> : () -> ()
    %cst_26 = arith.constant dense<0.000000e+00> : vector<4x8x8xf32>
    %54 = tpu.matmul %35, %44, %cst_26 {dimension_numbers = #tpu.dot_dimension_numbers<[2], [2], [1], [1], [0, 0, 0, 1, 1, 1], [0], [0]>} : vector<4x8x8xf32>, vector<4x8x8xf32>, vector<4x8x8xf32> -> vector<4x8x8xf32>
    "tpu.trace_stop"() : () -> ()
    %cst_27 = arith.constant 0.353553385 : f32
    %55 = vector.broadcast %cst_27 : f32 to vector<4x8x8xf32>
    %56 = arith.mulf %54, %55 : vector<4x8x8xf32>
    %cst_28 = arith.constant dense<0xFF800000> : vector<4x8xf32>
    %57 = vector.multi_reduction <maximumf>, %56, %cst_28 [2] : vector<4x8x8xf32> to vector<4x8xf32>
    %58 = vector.shape_cast %57 : vector<4x8xf32> to vector<4x8x1xf32>
    %59 = vector.broadcast %58 : vector<4x8x1xf32> to vector<4x8x8xf32>
    %60 = arith.subf %56, %59 : vector<4x8x8xf32>
    %61 = math.exp %60 : vector<4x8x8xf32>
    %cst_29 = arith.constant dense<0.000000e+00> : vector<4x8xf32>
    %62 = vector.multi_reduction <add>, %61, %cst_29 [2] : vector<4x8x8xf32> to vector<4x8xf32>
    %63 = vector.shape_cast %62 : vector<4x8xf32> to vector<4x8x1xf32>
    %64 = tpu.reciprocal %63 : vector<4x8x1xf32> -> vector<4x8x1xf32>
    %65 = vector.broadcast %64 : vector<4x8x1xf32> to vector<4x8x8xf32>
    %66 = arith.mulf %61, %65 : vector<4x8x8xf32>
    "tpu.trace_start"() <{level = 10 : i32, message = "hqk,hkd->hqd"}> : () -> ()
    %cst_30 = arith.constant dense<0.000000e+00> : vector<4x8x8xf32>
    %67 = tpu.matmul %66, %53, %cst_30 {dimension_numbers = #tpu.dot_dimension_numbers<[2], [1], [1], [2], [0, 0, 0, 1, 1, 2], [0], [0]>} : vector<4x8x8xf32>, vector<4x8x8xf32>, vector<4x8x8xf32> -> vector<4x8x8xf32>
    "tpu.trace_stop"() : () -> ()
    %68 = vector.extract_strided_slice %67 {offsets = [0, 0, 0], sizes = [1, 8, 8], strides = [1, 1, 1]} : vector<4x8x8xf32> to vector<1x8x8xf32>
    %69 = vector.shape_cast %68 : vector<1x8x8xf32> to vector<8x8xf32>
    %70 = vector.extract_strided_slice %67 {offsets = [1, 0, 0], sizes = [1, 8, 8], strides = [1, 1, 1]} : vector<4x8x8xf32> to vector<1x8x8xf32>
    %71 = vector.shape_cast %70 : vector<1x8x8xf32> to vector<8x8xf32>
    %72 = vector.extract_strided_slice %67 {offsets = [2, 0, 0], sizes = [1, 8, 8], strides = [1, 1, 1]} : vector<4x8x8xf32> to vector<1x8x8xf32>
    %73 = vector.shape_cast %72 : vector<1x8x8xf32> to vector<8x8xf32>
    %74 = vector.extract_strided_slice %67 {offsets = [3, 0, 0], sizes = [1, 8, 8], strides = [1, 1, 1]} : vector<4x8x8xf32> to vector<1x8x8xf32>
    %75 = vector.shape_cast %74 : vector<1x8x8xf32> to vector<8x8xf32>
    %76 = tpu.concatenate %69, %71, %73, %75 in 1 : vector<8x8xf32>, vector<8x8xf32>, vector<8x8xf32>, vector<8x8xf32> -> vector<8x32xf32>
    %c0_31 = arith.constant 0 : index
    %c0_32 = arith.constant 0 : index
    %77 = vector.load %arg6[%c0_31, %c0_32] : memref<32x32xf32, #tpu.memory_space<vmem>>, vector<32x32xf32>
    %cst_33 = arith.constant dense<0.000000e+00> : vector<8x32xf32>
    %78 = tpu.matmul %76, %77, %cst_33 {dimension_numbers = #tpu.dot_dimension_numbers<[1], [0], [0], [1], [0, 0, 1, 1], [], []>} : vector<8x32xf32>, vector<32x32xf32>, vector<8x32xf32> -> vector<8x32xf32>
    %c0_34 = arith.constant 0 : index
    %c0_35 = arith.constant 0 : index
    %79 = vector.load %arg7[%c0_34, %c0_35] : memref<1x32xf32, #tpu.memory_space<vmem>>, vector<1x32xf32>
    %80 = vector.broadcast %79 : vector<1x32xf32> to vector<8x32xf32>
    %81 = arith.addf %78, %80 : vector<8x32xf32>
    %c0_36 = arith.constant 0 : index
    %c0_37 = arith.constant 0 : index
    %c0_38 = arith.constant 0 : index
    %82 = vector.load %arg8[%c0_36, %c0_37, %c0_38] : memref<1x8x32xf32, #tpu.memory_space<vmem>>, vector<1x8x32xf32>
    %83 = vector.shape_cast %82 : vector<1x8x32xf32> to vector<8x32xf32>
    %84 = vector.shape_cast %81 : vector<8x32xf32> to vector<1x8x32xf32>
    tpu.vector_store %arg8[%c0_36, %c0_37, %c0_38], %84 {strides = array<i32>} : memref<1x8x32xf32, #tpu.memory_space<vmem>>, vector<1x8x32xf32>,
    %c0_39 = arith.constant 0 : index
    %c0_40 = arith.constant 0 : index
    %c0_41 = arith.constant 0 : index
    %c0_42 = arith.constant 0 : index
    %85 = vector.load %arg9[%c0_39, %c0_40, %c0_41, %c0_42] : memref<1x4x8x8xf32, #tpu.memory_space<vmem>>, vector<1x4x8x8xf32>
    %86 = vector.shape_cast %85 : vector<1x4x8x8xf32> to vector<4x8x8xf32>
    %87 = vector.shape_cast %66 : vector<4x8x8xf32> to vector<1x4x8x8xf32>
    tpu.vector_store %arg9[%c0_39, %c0_40, %c0_41, %c0_42], %87 {strides = array<i32>} : memref<1x4x8x8xf32, #tpu.memory_space<vmem>>, vector<1x4x8x8xf32>,
    return
  }
  func.func @transform_0(%arg0: i32) -> (i32, i32, i32) {
    %c0_i32 = arith.constant 0 : i32
    %c0_i32_0 = arith.constant 0 : i32
    %c0_i32_1 = arith.constant 0 : i32
    return %arg0, %c0_i32, %c0_i32_0 : i32, i32, i32
  }
  func.func @transform_1(%arg0: i32) -> (i32, i32, i32) {
    %c0_i32 = arith.constant 0 : i32
    %c0_i32_0 = arith.constant 0 : i32
    %c0_i32_1 = arith.constant 0 : i32
    return %arg0, %c0_i32, %c0_i32_0 : i32, i32, i32
  }
  func.func @transform_2(%arg0: i32) -> (i32, i32, i32) {
    %c0_i32 = arith.constant 0 : i32
    %c0_i32_0 = arith.constant 0 : i32
    %c0_i32_1 = arith.constant 0 : i32
    return %arg0, %c0_i32, %c0_i32_0 : i32, i32, i32
  }
  func.func @transform_3(%arg0: i32) -> (i32, i32, i32) {
    %c0_i32 = arith.constant 0 : i32
    %c0_i32_0 = arith.constant 0 : i32
    %c0_i32_1 = arith.constant 0 : i32
    %c0_i32_2 = arith.constant 0 : i32
    return %c0_i32, %c0_i32_0, %c0_i32_1 : i32, i32, i32
  }
  func.func @transform_4(%arg0: i32) -> (i32, i32, i32) {
    %c0_i32 = arith.constant 0 : i32
    %c0_i32_0 = arith.constant 0 : i32
    %c0_i32_1 = arith.constant 0 : i32
    %c0_i32_2 = arith.constant 0 : i32
    return %c0_i32, %c0_i32_0, %c0_i32_1 : i32, i32, i32
  }
  func.func @transform_5(%arg0: i32) -> (i32, i32) {
    %c0_i32 = arith.constant 0 : i32
    %c0_i32_0 = arith.constant 0 : i32
    %c0_i32_1 = arith.constant 0 : i32
    return %c0_i32, %c0_i32_0 : i32, i32
  }
  func.func @transform_6(%arg0: i32) -> (i32, i32) {
    %c0_i32 = arith.constant 0 : i32
    %c0_i32_0 = arith.constant 0 : i32
    %c0_i32_1 = arith.constant 0 : i32
    return %c0_i32, %c0_i32_0 : i32, i32
  }
  func.func @transform_7(%arg0: i32) -> (i32, i32, i32) {
    %c0_i32 = arith.constant 0 : i32
    %c0_i32_0 = arith.constant 0 : i32
    %c0_i32_1 = arith.constant 0 : i32
    return %arg0, %c0_i32, %c0_i32_0 : i32, i32, i32
  }
  func.func @transform_8(%arg0: i32) -> (i32, i32, i32, i32) {
    %c0_i32 = arith.constant 0 : i32
    %c0_i32_0 = arith.constant 0 : i32
    %c0_i32_1 = arith.constant 0 : i32
    %c0_i32_2 = arith.constant 0 : i32
    return %arg0, %c0_i32, %c0_i32_0, %c0_i32_1 : i32, i32, i32, i32
  }
}

</mosaic_0001>

<llo_original>
// kernel: tpu_custom_call.1
$region0: #{tpu_custom_call.1}
  #allocation0 [shape = 'u32[]', space=smem, size = 0x4, offset = 0x4, fixed_abs, tag = 'smem constant byte address 0x4 - core index']
  #allocation1 [shape = 'u32[144,128]{1,0:T(1,128)}', space=vmem, size = 0x12000, scoped, tag = 'internal scratch']
  %s0 = inlined_call_operand.hbm [shape: f32[2,8,32], index: 0, kind: input, shape index: {}]
  %s1 = inlined_call_operand.hbm [shape: f32[2,8,32], index: 1, kind: input, shape index: {}]
  %s2 = inlined_call_operand.hbm [shape: f32[2,8,32], index: 2, kind: input, shape index: {}]
  %s3 = inlined_call_operand.hbm [shape: f32[3,32,32], index: 3, kind: input, shape index: {}]
  %s4 = inlined_call_operand.vmem [shape: f32[3,1,32], index: 4, kind: input, shape index: {}]
  %s5 = inlined_call_operand.hbm [shape: f32[32,32], index: 5, kind: input, shape index: {}]
  %s6 = inlined_call_operand.vmem [shape: f32[1,32], index: 6, kind: input, shape index: {}]
  %s7 = inlined_call_operand.hbm [shape: f32[2,8,32], index: 7, kind: output, shape index: {0}]
  %s8 = inlined_call_operand.hbm [shape: f32[2,4,8,8], index: 8, kind: output, shape index: {1}]
  %9 = xla_tuple %s7, %s8
  %s10 = sld [smem:[#allocation0]]
  $region89: #{tpu_custom_call.1} parent=0
    _
  %s12 = ssub.s32 1, %s10
  %s13 = scalar_select 0, %s12, %s10
  $region1: #{tpu_custom_call.1} parent=0
    #allocation2 [shape = 'u8[8192]{0}', space=vmem, size = 0x2000, scoped, tag = 'input window, operand 0']
    #allocation3 [shape = 's32[2]{0}', space=sflag, size = 0x8, scoped, tag = 'scoped memory for tpu_custom_call.1']
    #allocation4 [shape = 's32[2]{0}', space=sflag, size = 0x8, scoped, tag = 'scoped memory for tpu_custom_call.1']
    #allocation5 [shape = 'u8[8192]{0}', space=vmem, size = 0x2000, scoped, tag = 'input window, operand 1']
    #allocation6 [shape = 's32[2]{0}', space=sflag, size = 0x8, scoped, tag = 'scoped memory for tpu_custom_call.1']
    #allocation7 [shape = 'u8[8192]{0}', space=vmem, size = 0x2000, scoped, tag = 'input window, operand 2']
    #allocation8 [shape = 'u8[49152]{0}', space=vmem, size = 0xc000, scoped, tag = 'input window, operand 3, single buffered']
    #allocation9 [shape = 's32[1]{0}', space=sflag, size = 0x4, scoped, tag = 'scoped memory for tpu_custom_call.1']
    #allocation10 [shape = 'u8[16384]{0}', space=vmem, size = 0x4000, scoped, tag = 'input window, operand 5, single buffered']
    #allocation11 [shape = 'u8[8192]{0}', space=vmem, size = 0x2000, scoped, tag = 'output window, operand 0']
    #allocation12 [shape = 'u8[32768]{0}', space=vmem, size = 0x8000, scoped, tag = 'output window, operand 1']
    #allocation13 [shape = 's32[2]{0}', space=sflag, size = 0x8, scoped, tag = 'scoped memory for tpu_custom_call.1']
    %14 = vsyncpa [#allocation3], 0
    %s15 = scalar_lea.sflag [#allocation3], 1
    %16 = vsyncpa %s15, 0
    %17 = vsyncpa [#allocation6], 0
    %s18 = scalar_lea.sflag [#allocation6], 1
    %19 = vsyncpa %s18, 0
    %20 = vsyncpa [#allocation9], 0
    %21 = vsyncpa [#allocation4], 0
    %s22 = scalar_lea.sflag [#allocation4], 1
    %23 = vsyncpa %s22, 0
    %24 = vsyncpa [#allocation13], 0
    %s25 = scalar_lea.sflag [#allocation13], 1
    %26 = vsyncpa %s25, 0
    loop: start=0, step=1, limit=4
    $region2: #{tpu_custom_call.1} parent=1 // loop_pre_header
      _
    $region3: #{tpu_custom_call.1} parent=1 // loop_header
      %s28 = sphi 0, %s32
      %p29 = scmp.ge.s32.totalorder %s28, 4
      %s38 = sphi 0, %s40
      %s41 = sphi 0, %s38
      %s42 = sphi 0, %s41
      %s58 = sphi 0, %s42
      %s64 = sphi 0, %s66
      %s67 = sphi 0, %s64
      %s68 = sphi 0, %s67
      %s84 = sphi 0, %s68
      %s90 = sphi 0, %s92
      %s93 = sphi 0, %s90
      %s94 = sphi 0, %s93
      %s110 = sphi 0, %s94
      %s114 = sphi 0, %s114
      %s116 = sphi 0, %s114
      %s117 = sphi 0, %s116
      %s131 = sphi 0, %s117
      %s135 = sphi 0, %s135
      %s137 = sphi 0, %s135
      %s138 = sphi 0, %s137
      %s152 = sphi 0, %s138
      %s156 = sphi 0, %s156
      %s158 = sphi 0, %s156
      %s159 = sphi 0, %s158
      %s173 = sphi 0, %s159
      %s177 = sphi 0, %s177
      %s179 = sphi 0, %s177
      %s180 = sphi 0, %s179
      %s194 = sphi 0, %s180
      %s200 = sphi 0, %s202
      %s203 = sphi 0, %s200
      %s204 = sphi 0, %s203
      %s220 = sphi 0, %s204
      %s226 = sphi 0, %s228
      %s229 = sphi 0, %s226
      %s230 = sphi 0, %s229
      %s246 = sphi 0, %s230
    $region4: #{tpu_custom_call.1} parent=1 // loop_header_branch
      %31 = sbr.rel (%p29) target = $region8
    $region5: #{tpu_custom_call.1} parent=1 // loop_body
      %s33 = ssub.s32 %s28, 1
      %s34 = ssub.s32 %s28, 2
      %s35 = sadd.s32 %s28, 1
      %s36 = ssub.s32 %s28, %s35
      %p37 = scmp.eq.s32.totalorder %s36, 0
      %s39 = sadd.s32 %s38, 1
      %s40 = scalar_select %p37, %s38, %s39
      %p43 = pneg %p37
      %p44 = scmp.eq.s32.totalorder %s28, 1
      %p45 = por %p43, %p44
      %p46 = scmp.ne.s32.totalorder %s38, %s41
      %p47 = scmp.eq.s32.totalorder %s28, 0
      %p48 = por %p46, %p47
      %p49 = scmp.ne.s32.totalorder %s38, %s41
      %p50 = scmp.eq.s32.totalorder %s33, 1
      %p51 = por %p49, %p50
      %p52 = scmp.ne.s32.totalorder %s41, %s42
      %p53 = scmp.eq.s32.totalorder %s33, 0
      %p54 = por %p52, %p53
      %p55 = scmp.ne.s32.totalorder %s41, %s42
      %p56 = scmp.eq.s32.totalorder %s34, 1
      %p57 = por %p55, %p56
      %p59 = scmp.ne.s32.totalorder %s42, %s58
      %p60 = scmp.eq.s32.totalorder %s34, 0
      %p61 = por %p59, %p60
      %s62 = ssub.s32 %s28, %s35
      %p63 = scmp.eq.s32.totalorder %s62, 0
      %s65 = sadd.s32 %s64, 1
      %s66 = scalar_select %p63, %s64, %s65
      %p69 = pneg %p63
      %p70 = scmp.eq.s32.totalorder %s28, 1
      %p71 = por %p69, %p70
      %p72 = scmp.ne.s32.totalorder %s64, %s67
      %p73 = scmp.eq.s32.totalorder %s28, 0
      %p74 = por %p72, %p73
      %p75 = scmp.ne.s32.totalorder %s64, %s67
      %p76 = scmp.eq.s32.totalorder %s33, 1
      %p77 = por %p75, %p76
      %p78 = scmp.ne.s32.totalorder %s67, %s68
      %p79 = scmp.eq.s32.totalorder %s33, 0
      %p80 = por %p78, %p79
      %p81 = scmp.ne.s32.totalorder %s67, %s68
      %p82 = scmp.eq.s32.totalorder %s34, 1
      %p83 = por %p81, %p82
      %p85 = scmp.ne.s32.totalorder %s68, %s84
      %p86 = scmp.eq.s32.totalorder %s34, 0
      %p87 = por %p85, %p86
      %s88 = ssub.s32 %s28, %s35
      %p89 = scmp.eq.s32.totalorder %s88, 0
      %s91 = sadd.s32 %s90, 1
      %s92 = scalar_select %p89, %s90, %s91
      %p95 = pneg %p89
      %p96 = scmp.eq.s32.totalorder %s28, 1
      %p97 = por %p95, %p96
      %p98 = scmp.ne.s32.totalorder %s90, %s93
      %p99 = scmp.eq.s32.totalorder %s28, 0
      %p100 = por %p98, %p99
      %p101 = scmp.ne.s32.totalorder %s90, %s93
      %p102 = scmp.eq.s32.totalorder %s33, 1
      %p103 = por %p101, %p102
      %p104 = scmp.ne.s32.totalorder %s93, %s94
      %p105 = scmp.eq.s32.totalorder %s33, 0
      %p106 = por %p104, %p105
      %p107 = scmp.ne.s32.totalorder %s93, %s94
      %p108 = scmp.eq.s32.totalorder %s34, 1
      %p109 = por %p107, %p108
      %p111 = scmp.ne.s32.totalorder %s94, %s110
      %p112 = scmp.eq.s32.totalorder %s34, 0
      %p113 = por %p111, %p112
      %s115 = sadd.s32 %s114, 1
      %p118 = scmp.eq.s32.totalorder %s28, 1
      %p119 = scmp.ne.s32.totalorder %s114, %s116
      %p120 = scmp.eq.s32.totalorder %s28, 0
      %p121 = por %p119, %p120
      %p122 = scmp.ne.s32.totalorder %s114, %s116
      %p123 = scmp.eq.s32.totalorder %s33, 1
      %p124 = por %p122, %p123
      %p125 = scmp.ne.s32.totalorder %s116, %s117
      %p126 = scmp.eq.s32.totalorder %s33, 0
      %p127 = por %p125, %p126
      %p128 = scmp.ne.s32.totalorder %s116, %s117
      %p129 = scmp.eq.s32.totalorder %s34, 1
      %p130 = por %p128, %p129
      %p132 = scmp.ne.s32.totalorder %s117, %s131
      %p133 = scmp.eq.s32.totalorder %s34, 0
      %p134 = por %p132, %p133
      %s136 = sadd.s32 %s135, 1
      %p139 = scmp.eq.s32.totalorder %s28, 1
      %p140 = scmp.ne.s32.totalorder %s135, %s137
      %p141 = scmp.eq.s32.totalorder %s28, 0
      %p142 = por %p140, %p141
      %p143 = scmp.ne.s32.totalorder %s135, %s137
      %p144 = scmp.eq.s32.totalorder %s33, 1
      %p145 = por %p143, %p144
      %p146 = scmp.ne.s32.totalorder %s137, %s138
      %p147 = scmp.eq.s32.totalorder %s33, 0
      %p148 = por %p146, %p147
      %p149 = scmp.ne.s32.totalorder %s137, %s138
      %p150 = scmp.eq.s32.totalorder %s34, 1
      %p151 = por %p149, %p150
      %p153 = scmp.ne.s32.totalorder %s138, %s152
      %p154 = scmp.eq.s32.totalorder %s34, 0
      %p155 = por %p153, %p154
      %s157 = sadd.s32 %s156, 1
      %p160 = scmp.eq.s32.totalorder %s28, 1
      %p161 = scmp.ne.s32.totalorder %s156, %s158
      %p162 = scmp.eq.s32.totalorder %s28, 0
      %p163 = por %p161, %p162
      %p164 = scmp.ne.s32.totalorder %s156, %s158
      %p165 = scmp.eq.s32.totalorder %s33, 1
      %p166 = por %p164, %p165
      %p167 = scmp.ne.s32.totalorder %s158, %s159
      %p168 = scmp.eq.s32.totalorder %s33, 0
      %p169 = por %p167, %p168
      %p170 = scmp.ne.s32.totalorder %s158, %s159
      %p171 = scmp.eq.s32.totalorder %s34, 1
      %p172 = por %p170, %p171
      %p174 = scmp.ne.s32.totalorder %s159, %s173
      %p175 = scmp.eq.s32.totalorder %s34, 0
      %p176 = por %p174, %p175
      %s178 = sadd.s32 %s177, 1
      %p181 = scmp.eq.s32.totalorder %s28, 1
      %p182 = scmp.ne.s32.totalorder %s177, %s179
      %p183 = scmp.eq.s32.totalorder %s28, 0
      %p184 = por %p182, %p183
      %p185 = scmp.ne.s32.totalorder %s177, %s179
      %p186 = scmp.eq.s32.totalorder %s33, 1
      %p187 = por %p185, %p186
      %p188 = scmp.ne.s32.totalorder %s179, %s180
      %p189 = scmp.eq.s32.totalorder %s33, 0
      %p190 = por %p188, %p189
      %p191 = scmp.ne.s32.totalorder %s179, %s180
      %p192 = scmp.eq.s32.totalorder %s34, 1
      %p193 = por %p191, %p192
      %p195 = scmp.ne.s32.totalorder %s180, %s194
      %p196 = scmp.eq.s32.totalorder %s34, 0
      %p197 = por %p195, %p196
      %s198 = ssub.s32 %s28, %s35
      %p199 = scmp.eq.s32.totalorder %s198, 0
      %s201 = sadd.s32 %s200, 1
      %s202 = scalar_select %p199, %s200, %s201
      %p205 = pneg %p199
      %p206 = scmp.eq.s32.totalorder %s28, 1
      %p207 = por %p205, %p206
      %p208 = scmp.ne.s32.totalorder %s200, %s203
      %p209 = scmp.eq.s32.totalorder %s28, 0
      %p210 = por %p208, %p209
      %p211 = scmp.ne.s32.totalorder %s200, %s203
      %p212 = scmp.eq.s32.totalorder %s33, 1
      %p213 = por %p211, %p212
      %p214 = scmp.ne.s32.totalorder %s203, %s204
      %p215 = scmp.eq.s32.totalorder %s33, 0
      %p216 = por %p214, %p215
      %p217 = scmp.ne.s32.totalorder %s203, %s204
      %p218 = scmp.eq.s32.totalorder %s34, 1
      %p219 = por %p217, %p218
      %p221 = scmp.ne.s32.totalorder %s204, %s220
      %p222 = scmp.eq.s32.totalorder %s34, 0
      %p223 = por %p221, %p222
      %s224 = ssub.s32 %s28, %s35
      %p225 = scmp.eq.s32.totalorder %s224, 0
      %s227 = sadd.s32 %s226, 1
      %s228 = scalar_select %p225, %s226, %s227
      %p231 = pneg %p225
      %p232 = scmp.eq.s32.totalorder %s28, 1
      %p233 = por %p231, %p232
      %p234 = scmp.ne.s32.totalorder %s226, %s229
      %p235 = scmp.eq.s32.totalorder %s28, 0
      %p236 = por %p234, %p235
      %p237 = scmp.ne.s32.totalorder %s226, %s229
      %p238 = scmp.eq.s32.totalorder %s33, 1
      %p239 = por %p237, %p238
      %p240 = scmp.ne.s32.totalorder %s229, %s230
      %p241 = scmp.eq.s32.totalorder %s33, 0
      %p242 = por %p240, %p241
      %p243 = scmp.ne.s32.totalorder %s229, %s230
      %p244 = scmp.eq.s32.totalorder %s34, 1
      %p245 = por %p243, %p244
      %p247 = scmp.ne.s32.totalorder %s230, %s246
      %p248 = scmp.eq.s32.totalorder %s34, 0
      %p249 = por %p247, %p248
      %p250 = scmp.le.s32.totalorder 1, %s28
      %p251 = scmp.lt.s32.totalorder %s28, 3
      %p252 = pnand %p250, %p251
      %p253 = pneg %p252
      // Predicated region
      $region9: #{tpu_custom_call.1} parent=5 // pred_check
        _
      $region10: #{tpu_custom_call.1} parent=5 // pred_check_branch
        %255 = sbr.rel (%p252) target = $region12
      $region11: #{tpu_custom_call.1} parent=5 // pred_region
        %s256 = ssub.s32 %s28, 1
        // Predicated region
        $region13: #{tpu_custom_call.1} parent=11 // pred_check
          %p257 = pneg %p127
        $region14: #{tpu_custom_call.1} parent=11 // pred_check_branch
          %259 = sbr.rel (%p257) target = $region16
        $region15: #{tpu_custom_call.1} parent=11 // pred_region
          %s261 = ssub.s32 1536, 1536
          %262 = vsyncadd [#allocation9], %s261
          %s263 = sshll.u32 [#allocation8], 4
          %s264 = int_to_ptr.vmem [resolvable:$true] %s263
          %269 = dma.hbm_to_vmem [thread:$0]  %s3, 1536, %s264, [#allocation9], 128, 128, 8
        $region16: #{tpu_custom_call.1} parent=11 // pred_fallthru
          _
        // Predicated region
        $region17: #{tpu_custom_call.1} parent=11 // pred_check
          %p270 = pneg %p148
        $region18: #{tpu_custom_call.1} parent=11 // pred_check_branch
          %272 = sbr.rel (%p270) target = $region20
        $region19: #{tpu_custom_call.1} parent=11 // pred_region
          _
        $region20: #{tpu_custom_call.1} parent=11 // pred_fallthru
          _
        // Predicated region
        $region21: #{tpu_custom_call.1} parent=11 // pred_check
          %p273 = pneg %p169
        $region22: #{tpu_custom_call.1} parent=11 // pred_check_branch
          %275 = sbr.rel (%p273) target = $region24
        $region23: #{tpu_custom_call.1} parent=11 // pred_region
          %s277 = ssub.s32 512, 512
          %278 = vsyncadd [#allocation9], %s277
          %s279 = sshll.u32 [#allocation10], 4
          %s280 = int_to_ptr.vmem [resolvable:$true] %s279
          %285 = dma.hbm_to_vmem [thread:$0]  %s5, 512, %s280, [#allocation9], 128, 128, 8
        $region24: #{tpu_custom_call.1} parent=11 // pred_fallthru
          _
        // Predicated region
        $region25: #{tpu_custom_call.1} parent=11 // pred_check
          %p286 = pneg %p190
        $region26: #{tpu_custom_call.1} parent=11 // pred_check_branch
          %288 = sbr.rel (%p286) target = $region28
        $region27: #{tpu_custom_call.1} parent=11 // pred_region
          _
        $region28: #{tpu_custom_call.1} parent=11 // pred_fallthru
          _
      $region12: #{tpu_custom_call.1} parent=5 // pred_fallthru
        _
      %p289 = scmp.lt.s32.totalorder %s28, 2
      // Predicated region
      $region29: #{tpu_custom_call.1} parent=5 // pred_check
        %p290 = pneg %p289
      $region30: #{tpu_custom_call.1} parent=5 // pred_check_branch
        %292 = sbr.rel (%p290) target = $region32
      $region31: #{tpu_custom_call.1} parent=5 // pred_region
        // Predicated region
        $region33: #{tpu_custom_call.1} parent=31 // pred_check
          %p293 = pneg %p48
        $region34: #{tpu_custom_call.1} parent=31 // pred_check_branch
          %295 = sbr.rel (%p293) target = $region36
        $region35: #{tpu_custom_call.1} parent=31 // pred_region
          %s296 = sand.u32 %s38, 1
          %s297 = scalar_lea.sflag [#allocation3], %s296
          %s298 = sand.u32 %s38, 1
          %s299 = smul.addr %s298, 8
          %s300 = scalar_lea.vmem [#allocation2], %s299
          %s302 = ssub.s32 128, 128
          %303 = vsyncadd %s297, %s302
          %s304 = smul.addr %s28, 128
          %s305 = scalar_lea.hbm %s0, %s304
          %s307 = sshll.u32 %s300, 4
          %s308 = int_to_ptr.vmem [resolvable:$true] %s307
          %310 = dma.hbm_to_vmem [thread:$0]  %s305, 128, %s308, %s297
        $region36: #{tpu_custom_call.1} parent=31 // pred_fallthru
          _
        // Predicated region
        $region37: #{tpu_custom_call.1} parent=31 // pred_check
          %p311 = pneg %p74
        $region38: #{tpu_custom_call.1} parent=31 // pred_check_branch
          %313 = sbr.rel (%p311) target = $region40
        $region39: #{tpu_custom_call.1} parent=31 // pred_region
          %s314 = sand.u32 %s28, 1
          %s315 = scalar_lea.sflag [#allocation6], %s314
          %s316 = sand.u32 %s64, 1
          %s317 = smul.addr %s316, 8
          %s318 = scalar_lea.vmem [#allocation5], %s317
          %s320 = ssub.s32 128, 128
          %321 = vsyncadd %s315, %s320
          %s322 = smul.addr %s28, 128
          %s323 = scalar_lea.hbm %s1, %s322
          %s325 = sshll.u32 %s318, 4
          %s326 = int_to_ptr.vmem [resolvable:$true] %s325
          %328 = dma.hbm_to_vmem [thread:$0]  %s323, 128, %s326, %s315
        $region40: #{tpu_custom_call.1} parent=31 // pred_fallthru
          _
        // Predicated region
        $region41: #{tpu_custom_call.1} parent=31 // pred_check
          %p329 = pneg %p100
        $region42: #{tpu_custom_call.1} parent=31 // pred_check_branch
          %331 = sbr.rel (%p329) target = $region44
        $region43: #{tpu_custom_call.1} parent=31 // pred_region
          %s332 = sand.u32 %s28, 1
          %s333 = scalar_lea.sflag [#allocation6], %s332
          %s334 = sand.u32 %s90, 1
          %s335 = smul.addr %s334, 8
          %s336 = scalar_lea.vmem [#allocation7], %s335
          %s338 = ssub.s32 128, 128
          %339 = vsyncadd %s333, %s338
          %s340 = smul.addr %s28, 128
          %s341 = scalar_lea.hbm %s2, %s340
          %s343 = sshll.u32 %s336, 4
          %s344 = int_to_ptr.vmem [resolvable:$true] %s343
          %346 = dma.hbm_to_vmem [thread:$0]  %s341, 128, %s344, %s333
        $region44: #{tpu_custom_call.1} parent=31 // pred_fallthru
          _
      $region32: #{tpu_custom_call.1} parent=5 // pred_fallthru
        _
      %p347 = scmp.le.s32.totalorder 1, %s28
      %p348 = scmp.lt.s32.totalorder %s28, 3
      %p349 = pnand %p347, %p348
      %p350 = pneg %p349
      // Predicated region
      $region45: #{tpu_custom_call.1} parent=5 // pred_check
        _
      $region46: #{tpu_custom_call.1} parent=5 // pred_check_branch
        %352 = sbr.rel (%p349) target = $region48
      $region47: #{tpu_custom_call.1} parent=5 // pred_region
        %s353 = ssub.s32 %s28, 1
        %s354 = sand.u32 %s41, 1
        %s355 = scalar_lea.sflag [#allocation3], %s354
        %s356 = sand.u32 %s41, 1
        %s357 = smul.addr %s356, 8
        %s358 = scalar_lea.vmem [#allocation2], %s357
        // Predicated region
        $region49: #{tpu_custom_call.1} parent=47 // pred_check
          %p359 = pneg %p54
        $region50: #{tpu_custom_call.1} parent=47 // pred_check_branch
          %361 = sbr.rel (%p359) target = $region52
        $region51: #{tpu_custom_call.1} parent=47 // pred_region
          %362 = dma.done %s355, 128
        $region52: #{tpu_custom_call.1} parent=47 // pred_fallthru
          _
        %s363 = sand.u32 %s33, 1
        %s364 = scalar_lea.sflag [#allocation6], %s363
        %s365 = sand.u32 %s67, 1
        %s366 = smul.addr %s365, 8
        %s367 = scalar_lea.vmem [#allocation5], %s366
        // Predicated region
        $region53: #{tpu_custom_call.1} parent=47 // pred_check
          %p368 = pneg %p80
        $region54: #{tpu_custom_call.1} parent=47 // pred_check_branch
          %370 = sbr.rel (%p368) target = $region56
        $region55: #{tpu_custom_call.1} parent=47 // pred_region
          %371 = dma.done %s364, 128
        $region56: #{tpu_custom_call.1} parent=47 // pred_fallthru
          _
        %s372 = sand.u32 %s33, 1
        %s373 = scalar_lea.sflag [#allocation6], %s372
        %s374 = sand.u32 %s93, 1
        %s375 = smul.addr %s374, 8
        %s376 = scalar_lea.vmem [#allocation7], %s375
        // Predicated region
        $region57: #{tpu_custom_call.1} parent=47 // pred_check
          %p377 = pneg %p106
        $region58: #{tpu_custom_call.1} parent=47 // pred_check_branch
          %379 = sbr.rel (%p377) target = $region60
        $region59: #{tpu_custom_call.1} parent=47 // pred_region
          %380 = dma.done %s373, 128
        $region60: #{tpu_custom_call.1} parent=47 // pred_fallthru
          _
        // Predicated region
        $region61: #{tpu_custom_call.1} parent=47 // pred_check
          %p381 = pneg %p127
        $region62: #{tpu_custom_call.1} parent=47 // pred_check_branch
          %383 = sbr.rel (%p381) target = $region64
        $region63: #{tpu_custom_call.1} parent=47 // pred_region
          %384 = dma.done [#allocation9], 1536
        $region64: #{tpu_custom_call.1} parent=47 // pred_fallthru
          _
        // Predicated region
        $region65: #{tpu_custom_call.1} parent=47 // pred_check
          %p385 = pneg %p169
        $region66: #{tpu_custom_call.1} parent=47 // pred_check_branch
          %387 = sbr.rel (%p385) target = $region68
        $region67: #{tpu_custom_call.1} parent=47 // pred_region
          %388 = dma.done [#allocation9], 512
        $region68: #{tpu_custom_call.1} parent=47 // pred_fallthru
          _
        %s389 = sand.u32 %s41, 1
        %s390 = scalar_lea.sflag [#allocation3], %s389
        %s391 = sand.u32 %s41, 1
        %s392 = smul.addr %s391, 8
        %s393 = scalar_lea.vmem [#allocation2], %s392
        %p394 = pneg %p54
        %p395 = pneg %p51
        %s396 = sand.u32 %s33, 1
        %s397 = scalar_lea.sflag [#allocation6], %s396
        %s398 = sand.u32 %s67, 1
        %s399 = smul.addr %s398, 8
        %s400 = scalar_lea.vmem [#allocation5], %s399
        %p401 = pneg %p80
        %p402 = pneg %p77
        %s403 = sand.u32 %s33, 1
        %s404 = scalar_lea.sflag [#allocation6], %s403
        %s405 = sand.u32 %s93, 1
        %s406 = smul.addr %s405, 8
        %s407 = scalar_lea.vmem [#allocation7], %s406
        %p408 = pneg %p106
        %p409 = pneg %p103
        %p410 = pneg %p127
        %p411 = pneg %p124
        %p412 = pneg %p148
        %p413 = pneg %p145
        %p414 = pneg %p169
        %p415 = pneg %p166
        %p416 = pneg %p190
        %p417 = pneg %p187
        %p418 = pneg %p216
        %p419 = pneg %p213
        %s420 = sand.u32 %s203, 1
        %s421 = scalar_lea.sflag [#allocation4], %s420
        %s422 = sand.u32 %s203, 1
        %s423 = smul.addr %s422, 8
        %s424 = scalar_lea.vmem [#allocation11], %s423
        %p425 = pneg %p242
        %p426 = pneg %p239
        %s427 = sand.u32 %s229, 1
        %s428 = scalar_lea.sflag [#allocation13], %s427
        %s429 = sand.u32 %s229, 1
        %s430 = smul.addr %s429, 32
        %s431 = scalar_lea.vmem [#allocation12], %s430
        %v432 = vld [vmem:[%s358] sm:$0xff]
        %v433 = vld [vmem:[#allocation8] sm:$0xff]
        %v434 = vld [vmem:[#allocation8 + $0x8] sm:$0xff]
        %v435 = vld [vmem:[#allocation8 + $0x10] sm:$0xff]
        %v436 = vld [vmem:[#allocation8 + $0x18] sm:$0xff]
        %v437 = vld [vmem:[%s4] sm:$0x1]
        %v439 = vlaneseq
        %v440 = vshrl.u32 %v439, 7
        %v441 = vsub.s32 0, %v440
        %v442 = vrot.slane %v437, %v441
        %vm444 = vcmask 261120
        %v446 = vsel %vm444, %v432, 0
        %448 = vmatprep.subr.mxu0 0.0
        %449 = vmatpush1.msra.mxu0 0.0
        %450 = vmatprep.subr.mxu0 0.0
        %451 = vmatpush1.msra.mxu0 0.0
        %452 = vmatprep.subr.mxu0 0.0
        %453 = vmatpush1.msra.mxu0 0.0
        %454 = vmatprep.subr.mxu0 0.0
        %455 = vmatpush1.msra.mxu0 0.0
        %456 = vmatprep.subr.mxu0 0.0
        %457 = vmatpush1.msra.mxu0 0.0
        %458 = vmatprep.subr.mxu0 0.0
        %459 = vmatpush1.msra.mxu0 0.0
        %460 = vmatprep.subr.mxu0 0.0
        %461 = vmatpush1.msra.mxu0 0.0
        %462 = vmatprep.subr.mxu0 0.0
        %463 = vmatpush1.msra.mxu0 0.0
        %464 = vmatprep.subr.mxu0 0.0
        %465 = vmatpush1.msra.mxu0 0.0
        %466 = vmatprep.subr.mxu0 0.0
        %467 = vmatpush1.msra.mxu0 0.0
        %468 = vmatprep.subr.mxu0 0.0
        %469 = vmatpush1.msra.mxu0 0.0
        %470 = vmatprep.subr.mxu0 0.0
        %471 = vmatpush1.msra.mxu0 0.0
        %472 = vmatprep.subr.mxu0 0.0
        %473 = vmatpush1.msra.mxu0 %v436
        %474 = vmatprep.subr.mxu0 0.0
        %475 = vmatpush1.msra.mxu0 %v435
        %476 = vmatprep.subr.mxu0 0.0
        %477 = vmatpush1.msra.mxu0 %v434
        %478 = vmatprep.subr.mxu0 0.0
        %479 = vmatpush1.msra.mxu0 %v433
        %480 = vmatprep.subr.mxu0 0.0
        %481 = vmatpush2.msra.mxu0 0.0
        %482 = vmatprep.subr.mxu0 0.0
        %483 = vmatpush2.msra.mxu0 0.0
        %484 = vmatprep.subr.mxu0 0.0
        %485 = vmatpush2.msra.mxu0 0.0
        %486 = vmatprep.subr.mxu0 0.0
        %487 = vmatpush2.msra.mxu0 0.0
        %488 = vmatprep.subr.mxu0 0.0
        %489 = vmatpush2.msra.mxu0 0.0
        %490 = vmatprep.subr.mxu0 0.0
        %491 = vmatpush2.msra.mxu0 0.0
        %492 = vmatprep.subr.mxu0 0.0
        %493 = vmatpush2.msra.mxu0 0.0
        %494 = vmatprep.subr.mxu0 0.0
        %495 = vmatpush2.msra.mxu0 0.0
        %496 = vmatprep.subr.mxu0 0.0
        %497 = vmatpush2.msra.mxu0 0.0
        %498 = vmatprep.subr.mxu0 0.0
        %499 = vmatpush2.msra.mxu0 0.0
        %500 = vmatprep.subr.mxu0 0.0
        %501 = vmatpush2.msra.mxu0 0.0
        %502 = vmatprep.subr.mxu0 0.0
        %503 = vmatpush2.msra.mxu0 0.0
        %504 = vmatprep.subr.mxu0 0.0
        %505 = vmatpush2.msra.mxu0 0.0
        %506 = vmatprep.subr.mxu0 0.0
        %507 = vmatpush2.msra.mxu0 0.0
        %508 = vmatprep.subr.mxu0 0.0
        %509 = vmatpush2.msra.mxu0 0.0
        %510 = vmatprep.subr.mxu0 0.0
        %511 = vmatpush2.msra.mxu0 0.0
        %512 = vmatprep.mubr.f32.mxu0 0.0
        %513 = vmatmul.mubr.f32.gmra.mxu0 %v446
        %v514 = vpop.f32.mrf.mxu0
        %v515 = vadd.f32 %v442, %v514
        %v516 = vpop.f32.mrf.mxu0
        %517 = vdwg.mxu0
        %v518 = vld [vmem:[%s367] sm:$0xff]
        %s519 = scalar_lea.vmem [#allocation8], 32
        %v520 = vld [vmem:[%s519] sm:$0xff]
        %v521 = vld [vmem:[%s519 + $0x8] sm:$0xff]
        %v522 = vld [vmem:[%s519 + $0x10] sm:$0xff]
        %v523 = vld [vmem:[%s519 + $0x18] sm:$0xff]
        %s524 = scalar_lea.vmem %s4, 1
        %v525 = vld [vmem:[%s524] sm:$0x1]
        %v527 = vlaneseq
        %v528 = vshrl.u32 %v527, 7
        %v529 = vsub.s32 0, %v528
        %v530 = vrot.slane %v525, %v529
        %v533 = vsel %vm444, %v518, 0
        %535 = vmatprep.subr.mxu0 0.0
        %536 = vmatpush1.msra.mxu0 0.0
        %537 = vmatprep.subr.mxu0 0.0
        %538 = vmatpush1.msra.mxu0 0.0
        %539 = vmatprep.subr.mxu0 0.0
        %540 = vmatpush1.msra.mxu0 0.0
        %541 = vmatprep.subr.mxu0 0.0
        %542 = vmatpush1.msra.mxu0 0.0
        %543 = vmatprep.subr.mxu0 0.0
        %544 = vmatpush1.msra.mxu0 0.0
        %545 = vmatprep.subr.mxu0 0.0
        %546 = vmatpush1.msra.mxu0 0.0
        %547 = vmatprep.subr.mxu0 0.0
        %548 = vmatpush1.msra.mxu0 0.0
        %549 = vmatprep.subr.mxu0 0.0
        %550 = vmatpush1.msra.mxu0 0.0
        %551 = vmatprep.subr.mxu0 0.0
        %552 = vmatpush1.msra.mxu0 0.0
        %553 = vmatprep.subr.mxu0 0.0
        %554 = vmatpush1.msra.mxu0 0.0
        %555 = vmatprep.subr.mxu0 0.0
        %556 = vmatpush1.msra.mxu0 0.0
        %557 = vmatprep.subr.mxu0 0.0
        %558 = vmatpush1.msra.mxu0 0.0
        %559 = vmatprep.subr.mxu0 0.0
        %560 = vmatpush1.msra.mxu0 %v523
        %561 = vmatprep.subr.mxu0 0.0
        %562 = vmatpush1.msra.mxu0 %v522
        %563 = vmatprep.subr.mxu0 0.0
        %564 = vmatpush1.msra.mxu0 %v521
        %565 = vmatprep.subr.mxu0 0.0
        %566 = vmatpush1.msra.mxu0 %v520
        %567 = vmatprep.subr.mxu0 0.0
        %568 = vmatpush2.msra.mxu0 0.0
        %569 = vmatprep.subr.mxu0 0.0
        %570 = vmatpush2.msra.mxu0 0.0
        %571 = vmatprep.subr.mxu0 0.0
        %572 = vmatpush2.msra.mxu0 0.0
        %573 = vmatprep.subr.mxu0 0.0
        %574 = vmatpush2.msra.mxu0 0.0
        %575 = vmatprep.subr.mxu0 0.0
        %576 = vmatpush2.msra.mxu0 0.0
        %577 = vmatprep.subr.mxu0 0.0
        %578 = vmatpush2.msra.mxu0 0.0
        %579 = vmatprep.subr.mxu0 0.0
        %580 = vmatpush2.msra.mxu0 0.0
        %581 = vmatprep.subr.mxu0 0.0
        %582 = vmatpush2.msra.mxu0 0.0
        %583 = vmatprep.subr.mxu0 0.0
        %584 = vmatpush2.msra.mxu0 0.0
        %585 = vmatprep.subr.mxu0 0.0
        %586 = vmatpush2.msra.mxu0 0.0
        %587 = vmatprep.subr.mxu0 0.0
        %588 = vmatpush2.msra.mxu0 0.0
        %589 = vmatprep.subr.mxu0 0.0
        %590 = vmatpush2.msra.mxu0 0.0
        %591 = vmatprep.subr.mxu0 0.0
        %592 = vmatpush2.msra.mxu0 0.0
        %593 = vmatprep.subr.mxu0 0.0
        %594 = vmatpush2.msra.mxu0 0.0
        %595 = vmatprep.subr.mxu0 0.0
        %596 = vmatpush2.msra.mxu0 0.0
        %597 = vmatprep.subr.mxu0 0.0
        %598 = vmatpush2.msra.mxu0 0.0
        %599 = vmatprep.mubr.f32.mxu0 0.0
        %600 = vmatmul.mubr.f32.gmra.mxu0 %v533
        %v601 = vpop.f32.mrf.mxu0
        %v602 = vadd.f32 %v530, %v601
        %v603 = vpop.f32.mrf.mxu0
        %604 = vdwg.mxu0
        %v605 = vld [vmem:[%s376] sm:$0xff]
        %s606 = scalar_lea.vmem [#allocation8], 64
        %v607 = vld [vmem:[%s606] sm:$0xff]
        %v608 = vld [vmem:[%s606 + $0x8] sm:$0xff]
        %v609 = vld [vmem:[%s606 + $0x10] sm:$0xff]
        %v610 = vld [vmem:[%s606 + $0x18] sm:$0xff]
        %s611 = scalar_lea.vmem %s4, 2
        %v612 = vld [vmem:[%s611] sm:$0x1]
        %v614 = vlaneseq
        %v615 = vshrl.u32 %v614, 7
        %v616 = vsub.s32 0, %v615
        %v617 = vrot.slane %v612, %v616
        %v620 = vsel %vm444, %v605, 0
        %622 = vmatprep.subr.mxu0 0.0
        %623 = vmatpush1.msra.mxu0 0.0
        %624 = vmatprep.subr.mxu0 0.0
        %625 = vmatpush1.msra.mxu0 0.0
        %626 = vmatprep.subr.mxu0 0.0
        %627 = vmatpush1.msra.mxu0 0.0
        %628 = vmatprep.subr.mxu0 0.0
        %629 = vmatpush1.msra.mxu0 0.0
        %630 = vmatprep.subr.mxu0 0.0
        %631 = vmatpush1.msra.mxu0 0.0
        %632 = vmatprep.subr.mxu0 0.0
        %633 = vmatpush1.msra.mxu0 0.0
        %634 = vmatprep.subr.mxu0 0.0
        %635 = vmatpush1.msra.mxu0 0.0
        %636 = vmatprep.subr.mxu0 0.0
        %637 = vmatpush1.msra.mxu0 0.0
        %638 = vmatprep.subr.mxu0 0.0
        %639 = vmatpush1.msra.mxu0 0.0
        %640 = vmatprep.subr.mxu0 0.0
        %641 = vmatpush1.msra.mxu0 0.0
        %642 = vmatprep.subr.mxu0 0.0
        %643 = vmatpush1.msra.mxu0 0.0
        %644 = vmatprep.subr.mxu0 0.0
        %645 = vmatpush1.msra.mxu0 0.0
        %646 = vmatprep.subr.mxu0 0.0
        %647 = vmatpush1.msra.mxu0 %v610
        %648 = vmatprep.subr.mxu0 0.0
        %649 = vmatpush1.msra.mxu0 %v609
        %650 = vmatprep.subr.mxu0 0.0
        %651 = vmatpush1.msra.mxu0 %v608
        %652 = vmatprep.subr.mxu0 0.0
        %653 = vmatpush1.msra.mxu0 %v607
        %654 = vmatprep.subr.mxu0 0.0
        %655 = vmatpush2.msra.mxu0 0.0
        %656 = vmatprep.subr.mxu0 0.0
        %657 = vmatpush2.msra.mxu0 0.0
        %658 = vmatprep.subr.mxu0 0.0
        %659 = vmatpush2.msra.mxu0 0.0
        %660 = vmatprep.subr.mxu0 0.0
        %661 = vmatpush2.msra.mxu0 0.0
        %662 = vmatprep.subr.mxu0 0.0
        %663 = vmatpush2.msra.mxu0 0.0
        %664 = vmatprep.subr.mxu0 0.0
        %665 = vmatpush2.msra.mxu0 0.0
        %666 = vmatprep.subr.mxu0 0.0
        %667 = vmatpush2.msra.mxu0 0.0
        %668 = vmatprep.subr.mxu0 0.0
        %669 = vmatpush2.msra.mxu0 0.0
        %670 = vmatprep.subr.mxu0 0.0
        %671 = vmatpush2.msra.mxu0 0.0
        %672 = vmatprep.subr.mxu0 0.0
        %673 = vmatpush2.msra.mxu0 0.0
        %674 = vmatprep.subr.mxu0 0.0
        %675 = vmatpush2.msra.mxu0 0.0
        %676 = vmatprep.subr.mxu0 0.0
        %677 = vmatpush2.msra.mxu0 0.0
        %678 = vmatprep.subr.mxu0 0.0
        %679 = vmatpush2.msra.mxu0 0.0
        %680 = vmatprep.subr.mxu0 0.0
        %681 = vmatpush2.msra.mxu0 0.0
        %682 = vmatprep.subr.mxu0 0.0
        %683 = vmatpush2.msra.mxu0 0.0
        %684 = vmatprep.subr.mxu0 0.0
        %685 = vmatpush2.msra.mxu0 0.0
        %686 = vmatprep.mubr.f32.mxu0 0.0
        %687 = vmatmul.mubr.f32.gmra.mxu0 %v620
        %v688 = vpop.f32.mrf.mxu0
        %v689 = vadd.f32 %v617, %v688
        %v690 = vpop.f32.mrf.mxu0
        %691 = vdwg.mxu0
        %693 = vrot.lane.b32.xlu0 %v515, 120
        %v694 = vpop.permute.xlu0 %693
        %695 = vrot.lane.b32.xlu0 %v515, 112
        %v696 = vpop.permute.xlu0 %695
        %697 = vrot.lane.b32.xlu0 %v515, 104
        %v698 = vpop.permute.xlu0 %697
        %700 = vrot.lane.b32.xlu0 %v602, 120
        %v701 = vpop.permute.xlu0 %700
        %702 = vrot.lane.b32.xlu0 %v602, 112
        %v703 = vpop.permute.xlu0 %702
        %704 = vrot.lane.b32.xlu0 %v602, 104
        %v705 = vpop.permute.xlu0 %704
        %707 = vrot.lane.b32.xlu0 %v689, 120
        %v708 = vpop.permute.xlu0 %707
        %710 = vrot.lane.b32.xlu0 %v689, 112
        %v711 = vpop.permute.xlu0 %710
        %713 = vrot.lane.b32.xlu0 %v689, 104
        %v714 = vpop.permute.xlu0 %713
        %vm716 = vcmask 64512
        %v717 = vsel %vm716, %v515, 0
        %v719 = vsel %vm716, %v602, 0
        %721 = vmatprep.subr.mxu0 0.0
        %722 = vmatpush1.xpose.msra.mxu0 0.0
        %723 = vmatprep.subr.mxu0 0.0
        %724 = vmatpush1.xpose.msra.mxu0 0.0
        %725 = vmatprep.subr.mxu0 0.0
        %726 = vmatpush1.xpose.msra.mxu0 0.0
        %727 = vmatprep.subr.mxu0 0.0
        %728 = vmatpush1.xpose.msra.mxu0 0.0
        %729 = vmatprep.subr.mxu0 0.0
        %730 = vmatpush1.xpose.msra.mxu0 0.0
        %731 = vmatprep.subr.mxu0 0.0
        %732 = vmatpush1.xpose.msra.mxu0 0.0
        %733 = vmatprep.subr.mxu0 0.0
        %734 = vmatpush1.xpose.msra.mxu0 0.0
        %735 = vmatprep.subr.mxu0 0.0
        %736 = vmatpush1.xpose.msra.mxu0 0.0
        %737 = vmatprep.subr.mxu0 0.0
        %738 = vmatpush1.xpose.msra.mxu0 0.0
        %739 = vmatprep.subr.mxu0 0.0
        %740 = vmatpush1.xpose.msra.mxu0 0.0
        %741 = vmatprep.subr.mxu0 0.0
        %742 = vmatpush1.xpose.msra.mxu0 0.0
        %743 = vmatprep.subr.mxu0 0.0
        %744 = vmatpush1.xpose.msra.mxu0 0.0
        %745 = vmatprep.subr.mxu0 0.0
        %746 = vmatpush1.xpose.msra.mxu0 0.0
        %747 = vmatprep.subr.mxu0 0.0
        %748 = vmatpush1.xpose.msra.mxu0 0.0
        %749 = vmatprep.subr.mxu0 0.0
        %750 = vmatpush1.xpose.msra.mxu0 0.0
        %751 = vmatprep.subr.mxu0 0.0
        %752 = vmatpush1.xpose.msra.mxu0 %v719
        %753 = vmatprep.subr.mxu0 0.0
        %754 = vmatpush2.xpose.msra.mxu0 0.0
        %755 = vmatprep.subr.mxu0 0.0
        %756 = vmatpush2.xpose.msra.mxu0 0.0
        %757 = vmatprep.subr.mxu0 0.0
        %758 = vmatpush2.xpose.msra.mxu0 0.0
        %759 = vmatprep.subr.mxu0 0.0
        %760 = vmatpush2.xpose.msra.mxu0 0.0
        %761 = vmatprep.subr.mxu0 0.0
        %762 = vmatpush2.xpose.msra.mxu0 0.0
        %763 = vmatprep.subr.mxu0 0.0
        %764 = vmatpush2.xpose.msra.mxu0 0.0
        %765 = vmatprep.subr.mxu0 0.0
        %766 = vmatpush2.xpose.msra.mxu0 0.0
        %767 = vmatprep.subr.mxu0 0.0
        %768 = vmatpush2.xpose.msra.mxu0 0.0
        %769 = vmatprep.subr.mxu0 0.0
        %770 = vmatpush2.xpose.msra.mxu0 0.0
        %771 = vmatprep.subr.mxu0 0.0
        %772 = vmatpush2.xpose.msra.mxu0 0.0
        %773 = vmatprep.subr.mxu0 0.0
        %774 = vmatpush2.xpose.msra.mxu0 0.0
        %775 = vmatprep.subr.mxu0 0.0
        %776 = vmatpush2.xpose.msra.mxu0 0.0
        %777 = vmatprep.subr.mxu0 0.0
        %778 = vmatpush2.xpose.msra.mxu0 0.0
        %779 = vmatprep.subr.mxu0 0.0
        %780 = vmatpush2.xpose.msra.mxu0 0.0
        %781 = vmatprep.subr.mxu0 0.0
        %782 = vmatpush2.xpose.msra.mxu0 0.0
        %783 = vmatprep.subr.mxu0 0.0
        %784 = vmatpush2.xpose.msra.mxu0 0.0
        %785 = vmatprep.mubr.f32.mxu0 0.0
        %786 = vmatmul.mubr.f32.gmra.mxu0 %v717
        %v787 = vpop.f32.mrf.mxu0
        %v788 = vadd.f32 0.0, %v787
        %v789 = vpop.f32.mrf.mxu0
        %790 = vdwg.mxu0
        %v791 = vsel %vm716, %v694, 0
        %v793 = vsel %vm716, %v701, 0
        %795 = vmatprep.subr.mxu0 0.0
        %796 = vmatpush1.xpose.msra.mxu0 0.0
        %797 = vmatprep.subr.mxu0 0.0
        %798 = vmatpush1.xpose.msra.mxu0 0.0
        %799 = vmatprep.subr.mxu0 0.0
        %800 = vmatpush1.xpose.msra.mxu0 0.0
        %801 = vmatprep.subr.mxu0 0.0
        %802 = vmatpush1.xpose.msra.mxu0 0.0
        %803 = vmatprep.subr.mxu0 0.0
        %804 = vmatpush1.xpose.msra.mxu0 0.0
        %805 = vmatprep.subr.mxu0 0.0
        %806 = vmatpush1.xpose.msra.mxu0 0.0
        %807 = vmatprep.subr.mxu0 0.0
        %808 = vmatpush1.xpose.msra.mxu0 0.0
        %809 = vmatprep.subr.mxu0 0.0
        %810 = vmatpush1.xpose.msra.mxu0 0.0
        %811 = vmatprep.subr.mxu0 0.0
        %812 = vmatpush1.xpose.msra.mxu0 0.0
        %813 = vmatprep.subr.mxu0 0.0
        %814 = vmatpush1.xpose.msra.mxu0 0.0
        %815 = vmatprep.subr.mxu0 0.0
        %816 = vmatpush1.xpose.msra.mxu0 0.0
        %817 = vmatprep.subr.mxu0 0.0
        %818 = vmatpush1.xpose.msra.mxu0 0.0
        %819 = vmatprep.subr.mxu0 0.0
        %820 = vmatpush1.xpose.msra.mxu0 0.0
        %821 = vmatprep.subr.mxu0 0.0
        %822 = vmatpush1.xpose.msra.mxu0 0.0
        %823 = vmatprep.subr.mxu0 0.0
        %824 = vmatpush1.xpose.msra.mxu0 0.0
        %825 = vmatprep.subr.mxu0 0.0
        %826 = vmatpush1.xpose.msra.mxu0 %v793
        %827 = vmatprep.subr.mxu0 0.0
        %828 = vmatpush2.xpose.msra.mxu0 0.0
        %829 = vmatprep.subr.mxu0 0.0
        %830 = vmatpush2.xpose.msra.mxu0 0.0
        %831 = vmatprep.subr.mxu0 0.0
        %832 = vmatpush2.xpose.msra.mxu0 0.0
        %833 = vmatprep.subr.mxu0 0.0
        %834 = vmatpush2.xpose.msra.mxu0 0.0
        %835 = vmatprep.subr.mxu0 0.0
        %836 = vmatpush2.xpose.msra.mxu0 0.0
        %837 = vmatprep.subr.mxu0 0.0
        %838 = vmatpush2.xpose.msra.mxu0 0.0
        %839 = vmatprep.subr.mxu0 0.0
        %840 = vmatpush2.xpose.msra.mxu0 0.0
        %841 = vmatprep.subr.mxu0 0.0
        %842 = vmatpush2.xpose.msra.mxu0 0.0
        %843 = vmatprep.subr.mxu0 0.0
        %844 = vmatpush2.xpose.msra.mxu0 0.0
        %845 = vmatprep.subr.mxu0 0.0
        %846 = vmatpush2.xpose.msra.mxu0 0.0
        %847 = vmatprep.subr.mxu0 0.0
        %848 = vmatpush2.xpose.msra.mxu0 0.0
        %849 = vmatprep.subr.mxu0 0.0
        %850 = vmatpush2.xpose.msra.mxu0 0.0
        %851 = vmatprep.subr.mxu0 0.0
        %852 = vmatpush2.xpose.msra.mxu0 0.0
        %853 = vmatprep.subr.mxu0 0.0
        %854 = vmatpush2.xpose.msra.mxu0 0.0
        %855 = vmatprep.subr.mxu0 0.0
        %856 = vmatpush2.xpose.msra.mxu0 0.0
        %857 = vmatprep.subr.mxu0 0.0
        %858 = vmatpush2.xpose.msra.mxu0 0.0
        %859 = vmatprep.mubr.f32.mxu0 0.0
        %860 = vmatmul.mubr.f32.gmra.mxu0 %v791
        %v861 = vpop.f32.mrf.mxu0
        %v862 = vadd.f32 0.0, %v861
        %v863 = vpop.f32.mrf.mxu0
        %864 = vdwg.mxu0
        %v865 = vsel %vm716, %v696, 0
        %v867 = vsel %vm716, %v703, 0
        %869 = vmatprep.subr.mxu0 0.0
        %870 = vmatpush1.xpose.msra.mxu0 0.0
        %871 = vmatprep.subr.mxu0 0.0
        %872 = vmatpush1.xpose.msra.mxu0 0.0
        %873 = vmatprep.subr.mxu0 0.0
        %874 = vmatpush1.xpose.msra.mxu0 0.0
        %875 = vmatprep.subr.mxu0 0.0
        %876 = vmatpush1.xpose.msra.mxu0 0.0
        %877 = vmatprep.subr.mxu0 0.0
        %878 = vmatpush1.xpose.msra.mxu0 0.0
        %879 = vmatprep.subr.mxu0 0.0
        %880 = vmatpush1.xpose.msra.mxu0 0.0
        %881 = vmatprep.subr.mxu0 0.0
        %882 = vmatpush1.xpose.msra.mxu0 0.0
        %883 = vmatprep.subr.mxu0 0.0
        %884 = vmatpush1.xpose.msra.mxu0 0.0
        %885 = vmatprep.subr.mxu0 0.0
        %886 = vmatpush1.xpose.msra.mxu0 0.0
        %887 = vmatprep.subr.mxu0 0.0
        %888 = vmatpush1.xpose.msra.mxu0 0.0
        %889 = vmatprep.subr.mxu0 0.0
        %890 = vmatpush1.xpose.msra.mxu0 0.0
        %891 = vmatprep.subr.mxu0 0.0
        %892 = vmatpush1.xpose.msra.mxu0 0.0
        %893 = vmatprep.subr.mxu0 0.0
        %894 = vmatpush1.xpose.msra.mxu0 0.0
        %895 = vmatprep.subr.mxu0 0.0
        %896 = vmatpush1.xpose.msra.mxu0 0.0
        %897 = vmatprep.subr.mxu0 0.0
        %898 = vmatpush1.xpose.msra.mxu0 0.0
        %899 = vmatprep.subr.mxu0 0.0
        %900 = vmatpush1.xpose.msra.mxu0 %v867
        %901 = vmatprep.subr.mxu0 0.0
        %902 = vmatpush2.xpose.msra.mxu0 0.0
        %903 = vmatprep.subr.mxu0 0.0
        %904 = vmatpush2.xpose.msra.mxu0 0.0
        %905 = vmatprep.subr.mxu0 0.0
        %906 = vmatpush2.xpose.msra.mxu0 0.0
        %907 = vmatprep.subr.mxu0 0.0
        %908 = vmatpush2.xpose.msra.mxu0 0.0
        %909 = vmatprep.subr.mxu0 0.0
        %910 = vmatpush2.xpose.msra.mxu0 0.0
        %911 = vmatprep.subr.mxu0 0.0
        %912 = vmatpush2.xpose.msra.mxu0 0.0
        %913 = vmatprep.subr.mxu0 0.0
        %914 = vmatpush2.xpose.msra.mxu0 0.0
        %915 = vmatprep.subr.mxu0 0.0
        %916 = vmatpush2.xpose.msra.mxu0 0.0
        %917 = vmatprep.subr.mxu0 0.0
        %918 = vmatpush2.xpose.msra.mxu0 0.0
        %919 = vmatprep.subr.mxu0 0.0
        %920 = vmatpush2.xpose.msra.mxu0 0.0
        %921 = vmatprep.subr.mxu0 0.0
        %922 = vmatpush2.xpose.msra.mxu0 0.0
        %923 = vmatprep.subr.mxu0 0.0
        %924 = vmatpush2.xpose.msra.mxu0 0.0
        %925 = vmatprep.subr.mxu0 0.0
        %926 = vmatpush2.xpose.msra.mxu0 0.0
        %927 = vmatprep.subr.mxu0 0.0
        %928 = vmatpush2.xpose.msra.mxu0 0.0
        %929 = vmatprep.subr.mxu0 0.0
        %930 = vmatpush2.xpose.msra.mxu0 0.0
        %931 = vmatprep.subr.mxu0 0.0
        %932 = vmatpush2.xpose.msra.mxu0 0.0
        %933 = vmatprep.mubr.f32.mxu0 0.0
        %934 = vmatmul.mubr.f32.gmra.mxu0 %v865
        %v935 = vpop.f32.mrf.mxu0
        %v936 = vadd.f32 0.0, %v935
        %v937 = vpop.f32.mrf.mxu0
        %938 = vdwg.mxu0
        %v939 = vsel %vm716, %v698, 0
        %v941 = vsel %vm716, %v705, 0
        %943 = vmatprep.subr.mxu0 0.0
        %944 = vmatpush1.xpose.msra.mxu0 0.0
        %945 = vmatprep.subr.mxu0 0.0
        %946 = vmatpush1.xpose.msra.mxu0 0.0
        %947 = vmatprep.subr.mxu0 0.0
        %948 = vmatpush1.xpose.msra.mxu0 0.0
        %949 = vmatprep.subr.mxu0 0.0
        %950 = vmatpush1.xpose.msra.mxu0 0.0
        %951 = vmatprep.subr.mxu0 0.0
        %952 = vmatpush1.xpose.msra.mxu0 0.0
        %953 = vmatprep.subr.mxu0 0.0
        %954 = vmatpush1.xpose.msra.mxu0 0.0
        %955 = vmatprep.subr.mxu0 0.0
        %956 = vmatpush1.xpose.msra.mxu0 0.0
        %957 = vmatprep.subr.mxu0 0.0
        %958 = vmatpush1.xpose.msra.mxu0 0.0
        %959 = vmatprep.subr.mxu0 0.0
        %960 = vmatpush1.xpose.msra.mxu0 0.0
        %961 = vmatprep.subr.mxu0 0.0
        %962 = vmatpush1.xpose.msra.mxu0 0.0
        %963 = vmatprep.subr.mxu0 0.0
        %964 = vmatpush1.xpose.msra.mxu0 0.0
        %965 = vmatprep.subr.mxu0 0.0
        %966 = vmatpush1.xpose.msra.mxu0 0.0
        %967 = vmatprep.subr.mxu0 0.0
        %968 = vmatpush1.xpose.msra.mxu0 0.0
        %969 = vmatprep.subr.mxu0 0.0
        %970 = vmatpush1.xpose.msra.mxu0 0.0
        %971 = vmatprep.subr.mxu0 0.0
        %972 = vmatpush1.xpose.msra.mxu0 0.0
        %973 = vmatprep.subr.mxu0 0.0
        %974 = vmatpush1.xpose.msra.mxu0 %v941
        %975 = vmatprep.subr.mxu0 0.0
        %976 = vmatpush2.xpose.msra.mxu0 0.0
        %977 = vmatprep.subr.mxu0 0.0
        %978 = vmatpush2.xpose.msra.mxu0 0.0
        %979 = vmatprep.subr.mxu0 0.0
        %980 = vmatpush2.xpose.msra.mxu0 0.0
        %981 = vmatprep.subr.mxu0 0.0
        %982 = vmatpush2.xpose.msra.mxu0 0.0
        %983 = vmatprep.subr.mxu0 0.0
        %984 = vmatpush2.xpose.msra.mxu0 0.0
        %985 = vmatprep.subr.mxu0 0.0
        %986 = vmatpush2.xpose.msra.mxu0 0.0
        %987 = vmatprep.subr.mxu0 0.0
        %988 = vmatpush2.xpose.msra.mxu0 0.0
        %989 = vmatprep.subr.mxu0 0.0
        %990 = vmatpush2.xpose.msra.mxu0 0.0
        %991 = vmatprep.subr.mxu0 0.0
        %992 = vmatpush2.xpose.msra.mxu0 0.0
        %993 = vmatprep.subr.mxu0 0.0
        %994 = vmatpush2.xpose.msra.mxu0 0.0
        %995 = vmatprep.subr.mxu0 0.0
        %996 = vmatpush2.xpose.msra.mxu0 0.0
        %997 = vmatprep.subr.mxu0 0.0
        %998 = vmatpush2.xpose.msra.mxu0 0.0
        %999 = vmatprep.subr.mxu0 0.0
        %1000 = vmatpush2.xpose.msra.mxu0 0.0
        %1001 = vmatprep.subr.mxu0 0.0
        %1002 = vmatpush2.xpose.msra.mxu0 0.0
        %1003 = vmatprep.subr.mxu0 0.0
        %1004 = vmatpush2.xpose.msra.mxu0 0.0
        %1005 = vmatprep.subr.mxu0 0.0
        %1006 = vmatpush2.xpose.msra.mxu0 0.0
        %1007 = vmatprep.mubr.f32.mxu0 0.0
        %1008 = vmatmul.mubr.f32.gmra.mxu0 %v939
        %v1009 = vpop.f32.mrf.mxu0
        %v1010 = vadd.f32 0.0, %v1009
        %v1011 = vpop.f32.mrf.mxu0
        %1012 = vdwg.mxu0
        %v1013 = vmul.f32 %v788, 0.35355338
        %v1014 = vmul.f32 %v862, 0.35355338
        %v1015 = vmul.f32 %v936, 0.35355338
        %v1016 = vmul.f32 %v1010, 0.35355338
        %v1017 = vsel %vm716, %v1013, -inf
        %1018 = vmax.xlane.f32.xlu0 %v1017
        %v1019 = vpop.xlane.xlu0 %1018
        %v1020 = vsel %vm716, %v1014, -inf
        %1021 = vmax.xlane.f32.xlu0 %v1020
        %v1022 = vpop.xlane.xlu0 %1021
        %v1023 = vsel %vm716, %v1015, -inf
        %1024 = vmax.xlane.f32.xlu0 %v1023
        %v1025 = vpop.xlane.xlu0 %1024
        %v1026 = vsel %vm716, %v1016, -inf
        %1027 = vmax.xlane.f32.xlu0 %v1026
        %v1028 = vpop.xlane.xlu0 %1027
        %v1029 = vsub.f32 %v1013, %v1019
        %v1030 = vsub.f32 %v1014, %v1022
        %v1031 = vsub.f32 %v1015, %v1025
        %v1032 = vsub.f32 %v1016, %v1028
        %v1033 = vmul.f32 %v1029, 1.442695
        %v1034 = vpow.pop %v1033
        %v1035 = vmul.f32 %v1030, 1.442695
        %v1036 = vpow.pop %v1035
        %v1037 = vmul.f32 %v1031, 1.442695
        %v1038 = vpow.pop %v1037
        %v1039 = vmul.f32 %v1032, 1.442695
        %v1040 = vpow.pop %v1039
        %v1041 = vsel %vm716, %v1034, 0.0
        %1042 = vadd.xlane.f32.xlu0 %v1041
        %v1043 = vpop.xlane.xlu0 %1042
        %v1044 = vsel %vm716, %v1036, 0.0
        %1045 = vadd.xlane.f32.xlu0 %v1044
        %v1046 = vpop.xlane.xlu0 %1045
        %v1047 = vsel %vm716, %v1038, 0.0
        %1048 = vadd.xlane.f32.xlu0 %v1047
        %v1049 = vpop.xlane.xlu0 %1048
        %v1050 = vsel %vm716, %v1040, 0.0
        %1051 = vadd.xlane.f32.xlu0 %v1050
        %v1052 = vpop.xlane.xlu0 %1051
        %v1053 = vrcp.pop %v1043
        %v1054 = vrcp.pop %v1046
        %v1055 = vrcp.pop %v1049
        %v1056 = vrcp.pop %v1052
        %v1057 = vmul.f32 %v1034, %v1053
        %v1058 = vmul.f32 %v1036, %v1054
        %v1059 = vmul.f32 %v1038, %v1055
        %v1060 = vmul.f32 %v1040, %v1056
        %v1062 = vsel %vm716, %v1057, 0
        %1064 = vmatprep.subr.mxu0 0.0
        %1065 = vmatpush1.msra.mxu0 0.0
        %1066 = vmatprep.subr.mxu0 0.0
        %1067 = vmatpush1.msra.mxu0 0.0
        %1068 = vmatprep.subr.mxu0 0.0
        %1069 = vmatpush1.msra.mxu0 0.0
        %1070 = vmatprep.subr.mxu0 0.0
        %1071 = vmatpush1.msra.mxu0 0.0
        %1072 = vmatprep.subr.mxu0 0.0
        %1073 = vmatpush1.msra.mxu0 0.0
        %1074 = vmatprep.subr.mxu0 0.0
        %1075 = vmatpush1.msra.mxu0 0.0
        %1076 = vmatprep.subr.mxu0 0.0
        %1077 = vmatpush1.msra.mxu0 0.0
        %1078 = vmatprep.subr.mxu0 0.0
        %1079 = vmatpush1.msra.mxu0 0.0
        %1080 = vmatprep.subr.mxu0 0.0
        %1081 = vmatpush1.msra.mxu0 0.0
        %1082 = vmatprep.subr.mxu0 0.0
        %1083 = vmatpush1.msra.mxu0 0.0
        %1084 = vmatprep.subr.mxu0 0.0
        %1085 = vmatpush1.msra.mxu0 0.0
        %1086 = vmatprep.subr.mxu0 0.0
        %1087 = vmatpush1.msra.mxu0 0.0
        %1088 = vmatprep.subr.mxu0 0.0
        %1089 = vmatpush1.msra.mxu0 0.0
        %1090 = vmatprep.subr.mxu0 0.0
        %1091 = vmatpush1.msra.mxu0 0.0
        %1092 = vmatprep.subr.mxu0 0.0
        %1093 = vmatpush1.msra.mxu0 0.0
        %1094 = vmatprep.subr.mxu0 0.0
        %1095 = vmatpush1.msra.mxu0 %v689
        %1096 = vmatprep.subr.mxu0 0.0
        %1097 = vmatpush2.msra.mxu0 0.0
        %1098 = vmatprep.subr.mxu0 0.0
        %1099 = vmatpush2.msra.mxu0 0.0
        %1100 = vmatprep.subr.mxu0 0.0
        %1101 = vmatpush2.msra.mxu0 0.0
        %1102 = vmatprep.subr.mxu0 0.0
        %1103 = vmatpush2.msra.mxu0 0.0
        %1104 = vmatprep.subr.mxu0 0.0
        %1105 = vmatpush2.msra.mxu0 0.0
        %1106 = vmatprep.subr.mxu0 0.0
        %1107 = vmatpush2.msra.mxu0 0.0
        %1108 = vmatprep.subr.mxu0 0.0
        %1109 = vmatpush2.msra.mxu0 0.0
        %1110 = vmatprep.subr.mxu0 0.0
        %1111 = vmatpush2.msra.mxu0 0.0
        %1112 = vmatprep.subr.mxu0 0.0
        %1113 = vmatpush2.msra.mxu0 0.0
        %1114 = vmatprep.subr.mxu0 0.0
        %1115 = vmatpush2.msra.mxu0 0.0
        %1116 = vmatprep.subr.mxu0 0.0
        %1117 = vmatpush2.msra.mxu0 0.0
        %1118 = vmatprep.subr.mxu0 0.0
        %1119 = vmatpush2.msra.mxu0 0.0
        %1120 = vmatprep.subr.mxu0 0.0
        %1121 = vmatpush2.msra.mxu0 0.0
        %1122 = vmatprep.subr.mxu0 0.0
        %1123 = vmatpush2.msra.mxu0 0.0
        %1124 = vmatprep.subr.mxu0 0.0
        %1125 = vmatpush2.msra.mxu0 0.0
        %1126 = vmatprep.subr.mxu0 0.0
        %1127 = vmatpush2.msra.mxu0 0.0
        %1128 = vmatprep.mubr.f32.mxu0 0.0
        %1129 = vmatmul.mubr.f32.gmra.mxu0 %v1062
        %v1130 = vpop.f32.mrf.mxu0
        %v1131 = vadd.f32 0.0, %v1130
        %v1132 = vpop.f32.mrf.mxu0
        %1133 = vdwg.mxu0
        %v1135 = vsel %vm716, %v1058, 0
        %1137 = vmatprep.subr.mxu0 0.0
        %1138 = vmatpush1.msra.mxu0 0.0
        %1139 = vmatprep.subr.mxu0 0.0
        %1140 = vmatpush1.msra.mxu0 0.0
        %1141 = vmatprep.subr.mxu0 0.0
        %1142 = vmatpush1.msra.mxu0 0.0
        %1143 = vmatprep.subr.mxu0 0.0
        %1144 = vmatpush1.msra.mxu0 0.0
        %1145 = vmatprep.subr.mxu0 0.0
        %1146 = vmatpush1.msra.mxu0 0.0
        %1147 = vmatprep.subr.mxu0 0.0
        %1148 = vmatpush1.msra.mxu0 0.0
        %1149 = vmatprep.subr.mxu0 0.0
        %1150 = vmatpush1.msra.mxu0 0.0
        %1151 = vmatprep.subr.mxu0 0.0
        %1152 = vmatpush1.msra.mxu0 0.0
        %1153 = vmatprep.subr.mxu0 0.0
        %1154 = vmatpush1.msra.mxu0 0.0
        %1155 = vmatprep.subr.mxu0 0.0
        %1156 = vmatpush1.msra.mxu0 0.0
        %1157 = vmatprep.subr.mxu0 0.0
        %1158 = vmatpush1.msra.mxu0 0.0
        %1159 = vmatprep.subr.mxu0 0.0
        %1160 = vmatpush1.msra.mxu0 0.0
        %1161 = vmatprep.subr.mxu0 0.0
        %1162 = vmatpush1.msra.mxu0 0.0
        %1163 = vmatprep.subr.mxu0 0.0
        %1164 = vmatpush1.msra.mxu0 0.0
        %1165 = vmatprep.subr.mxu0 0.0
        %1166 = vmatpush1.msra.mxu0 0.0
        %1167 = vmatprep.subr.mxu0 0.0
        %1168 = vmatpush1.msra.mxu0 %v708
        %1169 = vmatprep.subr.mxu0 0.0
        %1170 = vmatpush2.msra.mxu0 0.0
        %1171 = vmatprep.subr.mxu0 0.0
        %1172 = vmatpush2.msra.mxu0 0.0
        %1173 = vmatprep.subr.mxu0 0.0
        %1174 = vmatpush2.msra.mxu0 0.0
        %1175 = vmatprep.subr.mxu0 0.0
        %1176 = vmatpush2.msra.mxu0 0.0
        %1177 = vmatprep.subr.mxu0 0.0
        %1178 = vmatpush2.msra.mxu0 0.0
        %1179 = vmatprep.subr.mxu0 0.0
        %1180 = vmatpush2.msra.mxu0 0.0
        %1181 = vmatprep.subr.mxu0 0.0
        %1182 = vmatpush2.msra.mxu0 0.0
        %1183 = vmatprep.subr.mxu0 0.0
        %1184 = vmatpush2.msra.mxu0 0.0
        %1185 = vmatprep.subr.mxu0 0.0
        %1186 = vmatpush2.msra.mxu0 0.0
        %1187 = vmatprep.subr.mxu0 0.0
        %1188 = vmatpush2.msra.mxu0 0.0
        %1189 = vmatprep.subr.mxu0 0.0
        %1190 = vmatpush2.msra.mxu0 0.0
        %1191 = vmatprep.subr.mxu0 0.0
        %1192 = vmatpush2.msra.mxu0 0.0
        %1193 = vmatprep.subr.mxu0 0.0
        %1194 = vmatpush2.msra.mxu0 0.0
        %1195 = vmatprep.subr.mxu0 0.0
        %1196 = vmatpush2.msra.mxu0 0.0
        %1197 = vmatprep.subr.mxu0 0.0
        %1198 = vmatpush2.msra.mxu0 0.0
        %1199 = vmatprep.subr.mxu0 0.0
        %1200 = vmatpush2.msra.mxu0 0.0
        %1201 = vmatprep.mubr.f32.mxu0 0.0
        %1202 = vmatmul.mubr.f32.gmra.mxu0 %v1135
        %v1203 = vpop.f32.mrf.mxu0
        %v1204 = vadd.f32 0.0, %v1203
        %v1205 = vpop.f32.mrf.mxu0
        %1206 = vdwg.mxu0
        %v1208 = vsel %vm716, %v1059, 0
        %1210 = vmatprep.subr.mxu0 0.0
        %1211 = vmatpush1.msra.mxu0 0.0
        %1212 = vmatprep.subr.mxu0 0.0
        %1213 = vmatpush1.msra.mxu0 0.0
        %1214 = vmatprep.subr.mxu0 0.0
        %1215 = vmatpush1.msra.mxu0 0.0
        %1216 = vmatprep.subr.mxu0 0.0
        %1217 = vmatpush1.msra.mxu0 0.0
        %1218 = vmatprep.subr.mxu0 0.0
        %1219 = vmatpush1.msra.mxu0 0.0
        %1220 = vmatprep.subr.mxu0 0.0
        %1221 = vmatpush1.msra.mxu0 0.0
        %1222 = vmatprep.subr.mxu0 0.0
        %1223 = vmatpush1.msra.mxu0 0.0
        %1224 = vmatprep.subr.mxu0 0.0
        %1225 = vmatpush1.msra.mxu0 0.0
        %1226 = vmatprep.subr.mxu0 0.0
        %1227 = vmatpush1.msra.mxu0 0.0
        %1228 = vmatprep.subr.mxu0 0.0
        %1229 = vmatpush1.msra.mxu0 0.0
        %1230 = vmatprep.subr.mxu0 0.0
        %1231 = vmatpush1.msra.mxu0 0.0
        %1232 = vmatprep.subr.mxu0 0.0
        %1233 = vmatpush1.msra.mxu0 0.0
        %1234 = vmatprep.subr.mxu0 0.0
        %1235 = vmatpush1.msra.mxu0 0.0
        %1236 = vmatprep.subr.mxu0 0.0
        %1237 = vmatpush1.msra.mxu0 0.0
        %1238 = vmatprep.subr.mxu0 0.0
        %1239 = vmatpush1.msra.mxu0 0.0
        %1240 = vmatprep.subr.mxu0 0.0
        %1241 = vmatpush1.msra.mxu0 %v711
        %1242 = vmatprep.subr.mxu0 0.0
        %1243 = vmatpush2.msra.mxu0 0.0
        %1244 = vmatprep.subr.mxu0 0.0
        %1245 = vmatpush2.msra.mxu0 0.0
        %1246 = vmatprep.subr.mxu0 0.0
        %1247 = vmatpush2.msra.mxu0 0.0
        %1248 = vmatprep.subr.mxu0 0.0
        %1249 = vmatpush2.msra.mxu0 0.0
        %1250 = vmatprep.subr.mxu0 0.0
        %1251 = vmatpush2.msra.mxu0 0.0
        %1252 = vmatprep.subr.mxu0 0.0
        %1253 = vmatpush2.msra.mxu0 0.0
        %1254 = vmatprep.subr.mxu0 0.0
        %1255 = vmatpush2.msra.mxu0 0.0
        %1256 = vmatprep.subr.mxu0 0.0
        %1257 = vmatpush2.msra.mxu0 0.0
        %1258 = vmatprep.subr.mxu0 0.0
        %1259 = vmatpush2.msra.mxu0 0.0
        %1260 = vmatprep.subr.mxu0 0.0
        %1261 = vmatpush2.msra.mxu0 0.0
        %1262 = vmatprep.subr.mxu0 0.0
        %1263 = vmatpush2.msra.mxu0 0.0
        %1264 = vmatprep.subr.mxu0 0.0
        %1265 = vmatpush2.msra.mxu0 0.0
        %1266 = vmatprep.subr.mxu0 0.0
        %1267 = vmatpush2.msra.mxu0 0.0
        %1268 = vmatprep.subr.mxu0 0.0
        %1269 = vmatpush2.msra.mxu0 0.0
        %1270 = vmatprep.subr.mxu0 0.0
        %1271 = vmatpush2.msra.mxu0 0.0
        %1272 = vmatprep.subr.mxu0 0.0
        %1273 = vmatpush2.msra.mxu0 0.0
        %1274 = vmatprep.mubr.f32.mxu0 0.0
        %1275 = vmatmul.mubr.f32.gmra.mxu0 %v1208
        %v1276 = vpop.f32.mrf.mxu0
        %v1277 = vadd.f32 0.0, %v1276
        %v1278 = vpop.f32.mrf.mxu0
        %1279 = vdwg.mxu0
        %v1281 = vsel %vm716, %v1060, 0
        %1283 = vmatprep.subr.mxu0 0.0
        %1284 = vmatpush1.msra.mxu0 0.0
        %1285 = vmatprep.subr.mxu0 0.0
        %1286 = vmatpush1.msra.mxu0 0.0
        %1287 = vmatprep.subr.mxu0 0.0
        %1288 = vmatpush1.msra.mxu0 0.0
        %1289 = vmatprep.subr.mxu0 0.0
        %1290 = vmatpush1.msra.mxu0 0.0
        %1291 = vmatprep.subr.mxu0 0.0
        %1292 = vmatpush1.msra.mxu0 0.0
        %1293 = vmatprep.subr.mxu0 0.0
        %1294 = vmatpush1.msra.mxu0 0.0
        %1295 = vmatprep.subr.mxu0 0.0
        %1296 = vmatpush1.msra.mxu0 0.0
        %1297 = vmatprep.subr.mxu0 0.0
        %1298 = vmatpush1.msra.mxu0 0.0
        %1299 = vmatprep.subr.mxu0 0.0
        %1300 = vmatpush1.msra.mxu0 0.0
        %1301 = vmatprep.subr.mxu0 0.0
        %1302 = vmatpush1.msra.mxu0 0.0
        %1303 = vmatprep.subr.mxu0 0.0
        %1304 = vmatpush1.msra.mxu0 0.0
        %1305 = vmatprep.subr.mxu0 0.0
        %1306 = vmatpush1.msra.mxu0 0.0
        %1307 = vmatprep.subr.mxu0 0.0
        %1308 = vmatpush1.msra.mxu0 0.0
        %1309 = vmatprep.subr.mxu0 0.0
        %1310 = vmatpush1.msra.mxu0 0.0
        %1311 = vmatprep.subr.mxu0 0.0
        %1312 = vmatpush1.msra.mxu0 0.0
        %1313 = vmatprep.subr.mxu0 0.0
        %1314 = vmatpush1.msra.mxu0 %v714
        %1315 = vmatprep.subr.mxu0 0.0
        %1316 = vmatpush2.msra.mxu0 0.0
        %1317 = vmatprep.subr.mxu0 0.0
        %1318 = vmatpush2.msra.mxu0 0.0
        %1319 = vmatprep.subr.mxu0 0.0
        %1320 = vmatpush2.msra.mxu0 0.0
        %1321 = vmatprep.subr.mxu0 0.0
        %1322 = vmatpush2.msra.mxu0 0.0
        %1323 = vmatprep.subr.mxu0 0.0
        %1324 = vmatpush2.msra.mxu0 0.0
        %1325 = vmatprep.subr.mxu0 0.0
        %1326 = vmatpush2.msra.mxu0 0.0
        %1327 = vmatprep.subr.mxu0 0.0
        %1328 = vmatpush2.msra.mxu0 0.0
        %1329 = vmatprep.subr.mxu0 0.0
        %1330 = vmatpush2.msra.mxu0 0.0
        %1331 = vmatprep.subr.mxu0 0.0
        %1332 = vmatpush2.msra.mxu0 0.0
        %1333 = vmatprep.subr.mxu0 0.0
        %1334 = vmatpush2.msra.mxu0 0.0
        %1335 = vmatprep.subr.mxu0 0.0
        %1336 = vmatpush2.msra.mxu0 0.0
        %1337 = vmatprep.subr.mxu0 0.0
        %1338 = vmatpush2.msra.mxu0 0.0
        %1339 = vmatprep.subr.mxu0 0.0
        %1340 = vmatpush2.msra.mxu0 0.0
        %1341 = vmatprep.subr.mxu0 0.0
        %1342 = vmatpush2.msra.mxu0 0.0
        %1343 = vmatprep.subr.mxu0 0.0
        %1344 = vmatpush2.msra.mxu0 0.0
        %1345 = vmatprep.subr.mxu0 0.0
        %1346 = vmatpush2.msra.mxu0 0.0
        %1347 = vmatprep.mubr.f32.mxu0 0.0
        %1348 = vmatmul.mubr.f32.gmra.mxu0 %v1281
        %v1349 = vpop.f32.mrf.mxu0
        %v1350 = vadd.f32 0.0, %v1349
        %v1351 = vpop.f32.mrf.mxu0
        %1352 = vdwg.mxu0
        %1354 = vrot.lane.b32.xlu0 %v1204, 8
        %v1355 = vpop.permute.xlu0 %1354
        %1358 = vrot.lane.b32.xlu0 %v1277, 16
        %v1359 = vpop.permute.xlu0 %1358
        %1362 = vrot.lane.b32.xlu0 %v1350, 24
        %v1363 = vpop.permute.xlu0 %1362
        %v1365 = vsel %vm716, %v1131, %v1355
        %vm1366 = vcmask 130048
        %v1367 = vsel %vm1366, %v1365, %v1359
        %vm1368 = vcmask 195584
        %v1369 = vsel %vm1368, %v1367, %v1363
        %v1370 = vld [vmem:[#allocation10] sm:$0xff]
        %v1371 = vld [vmem:[#allocation10 + $0x8] sm:$0xff]
        %v1372 = vld [vmem:[#allocation10 + $0x10] sm:$0xff]
        %v1373 = vld [vmem:[#allocation10 + $0x18] sm:$0xff]
        %v1374 = vld [vmem:[%s6] sm:$0x1]
        %v1376 = vlaneseq
        %v1377 = vshrl.u32 %v1376, 7
        %v1378 = vsub.s32 0, %v1377
        %v1379 = vrot.slane %v1374, %v1378
        %v1382 = vsel %vm444, %v1369, 0
        %1384 = vmatprep.subr.mxu0 0.0
        %1385 = vmatpush1.msra.mxu0 0.0
        %1386 = vmatprep.subr.mxu0 0.0
        %1387 = vmatpush1.msra.mxu0 0.0
        %1388 = vmatprep.subr.mxu0 0.0
        %1389 = vmatpush1.msra.mxu0 0.0
        %1390 = vmatprep.subr.mxu0 0.0
        %1391 = vmatpush1.msra.mxu0 0.0
        %1392 = vmatprep.subr.mxu0 0.0
        %1393 = vmatpush1.msra.mxu0 0.0
        %1394 = vmatprep.subr.mxu0 0.0
        %1395 = vmatpush1.msra.mxu0 0.0
        %1396 = vmatprep.subr.mxu0 0.0
        %1397 = vmatpush1.msra.mxu0 0.0
        %1398 = vmatprep.subr.mxu0 0.0
        %1399 = vmatpush1.msra.mxu0 0.0
        %1400 = vmatprep.subr.mxu0 0.0
        %1401 = vmatpush1.msra.mxu0 0.0
        %1402 = vmatprep.subr.mxu0 0.0
        %1403 = vmatpush1.msra.mxu0 0.0
        %1404 = vmatprep.subr.mxu0 0.0
        %1405 = vmatpush1.msra.mxu0 0.0
        %1406 = vmatprep.subr.mxu0 0.0
        %1407 = vmatpush1.msra.mxu0 0.0
        %1408 = vmatprep.subr.mxu0 0.0
        %1409 = vmatpush1.msra.mxu0 %v1373
        %1410 = vmatprep.subr.mxu0 0.0
        %1411 = vmatpush1.msra.mxu0 %v1372
        %1412 = vmatprep.subr.mxu0 0.0
        %1413 = vmatpush1.msra.mxu0 %v1371
        %1414 = vmatprep.subr.mxu0 0.0
        %1415 = vmatpush1.msra.mxu0 %v1370
        %1416 = vmatprep.subr.mxu0 0.0
        %1417 = vmatpush2.msra.mxu0 0.0
        %1418 = vmatprep.subr.mxu0 0.0
        %1419 = vmatpush2.msra.mxu0 0.0
        %1420 = vmatprep.subr.mxu0 0.0
        %1421 = vmatpush2.msra.mxu0 0.0
        %1422 = vmatprep.subr.mxu0 0.0
        %1423 = vmatpush2.msra.mxu0 0.0
        %1424 = vmatprep.subr.mxu0 0.0
        %1425 = vmatpush2.msra.mxu0 0.0
        %1426 = vmatprep.subr.mxu0 0.0
        %1427 = vmatpush2.msra.mxu0 0.0
        %1428 = vmatprep.subr.mxu0 0.0
        %1429 = vmatpush2.msra.mxu0 0.0
        %1430 = vmatprep.subr.mxu0 0.0
        %1431 = vmatpush2.msra.mxu0 0.0
        %1432 = vmatprep.subr.mxu0 0.0
        %1433 = vmatpush2.msra.mxu0 0.0
        %1434 = vmatprep.subr.mxu0 0.0
        %1435 = vmatpush2.msra.mxu0 0.0
        %1436 = vmatprep.subr.mxu0 0.0
        %1437 = vmatpush2.msra.mxu0 0.0
        %1438 = vmatprep.subr.mxu0 0.0
        %1439 = vmatpush2.msra.mxu0 0.0
        %1440 = vmatprep.subr.mxu0 0.0
        %1441 = vmatpush2.msra.mxu0 0.0
        %1442 = vmatprep.subr.mxu0 0.0
        %1443 = vmatpush2.msra.mxu0 0.0
        %1444 = vmatprep.subr.mxu0 0.0
        %1445 = vmatpush2.msra.mxu0 0.0
        %1446 = vmatprep.subr.mxu0 0.0
        %1447 = vmatpush2.msra.mxu0 0.0
        %1448 = vmatprep.mubr.f32.mxu0 0.0
        %1449 = vmatmul.mubr.f32.gmra.mxu0 %v1382
        %v1450 = vpop.f32.mrf.mxu0
        %v1451 = vadd.f32 %v1379, %v1450
        %v1452 = vpop.f32.mrf.mxu0
        %1453 = vdwg.mxu0
        %1454 = vst.msk [vmem:[%s424] sm:$0xff] %vm444, %v1451
        %1455 = vst.msk [vmem:[%s431] sm:$0xff] %vm716, %v1057
        %1456 = vst.msk [vmem:[%s431 + $0x8] sm:$0xff] %vm716, %v1058
        %1457 = vst.msk [vmem:[%s431 + $0x10] sm:$0xff] %vm716, %v1059
        %1458 = vst.msk [vmem:[%s431 + $0x18] sm:$0xff] %vm716, %v1060
        %s1459 = sand.u32 %s203, 1
        %s1460 = scalar_lea.sflag [#allocation4], %s1459
        %s1461 = sand.u32 %s203, 1
        %s1462 = smul.addr %s1461, 8
        %s1463 = scalar_lea.vmem [#allocation11], %s1462
        %s1464 = sand.u32 %s229, 1
        %s1465 = scalar_lea.sflag [#allocation13], %s1464
        %s1466 = sand.u32 %s229, 1
        %s1467 = smul.addr %s1466, 32
        %s1468 = scalar_lea.vmem [#allocation12], %s1467
        // Predicated region
        $region69: #{tpu_custom_call.1} parent=47 // pred_check
          %p1469 = pneg %p213
        $region70: #{tpu_custom_call.1} parent=47 // pred_check_branch
          %1471 = sbr.rel (%p1469) target = $region72
        $region71: #{tpu_custom_call.1} parent=47 // pred_region
          %s1473 = ssub.s32 128, 128
          %1474 = vsyncadd %s1460, %s1473
          %s1475 = smul.addr %s33, 128
          %s1476 = scalar_lea.hbm %s7, %s1475
          %s1478 = sshll.u32 %s1463, 4
          %s1479 = int_to_ptr.vmem [resolvable:$true] %s1478
          %1481 = dma.vmem_to_hbm [thread:$0]  %s1479, 128, %s1476, %s1460
        $region72: #{tpu_custom_call.1} parent=47 // pred_fallthru
          _
        // Predicated region
        $region73: #{tpu_custom_call.1} parent=47 // pred_check
          %p1482 = pneg %p239
        $region74: #{tpu_custom_call.1} parent=47 // pred_check_branch
          %1484 = sbr.rel (%p1482) target = $region76
        $region75: #{tpu_custom_call.1} parent=47 // pred_region
          %s1486 = ssub.s32 512, 512
          %1487 = vsyncadd %s1465, %s1486
          %s1488 = smul.addr %s33, 4
          %s1489 = smul.addr %s1488, 128
          %s1490 = scalar_lea.hbm %s8, %s1489
          %s1491 = sshll.u32 %s1468, 4
          %s1492 = int_to_ptr.vmem [resolvable:$true] %s1491
          %1497 = dma.vmem_to_hbm [thread:$0]  %s1492, 512, %s1490, %s1465, 128, 128, 8
        $region76: #{tpu_custom_call.1} parent=47 // pred_fallthru
          _
      $region48: #{tpu_custom_call.1} parent=5 // pred_fallthru
        _
      %p1498 = scmp.le.s32.totalorder 2, %s28
      // Predicated region
      $region77: #{tpu_custom_call.1} parent=5 // pred_check
        %p1499 = pneg %p1498
      $region78: #{tpu_custom_call.1} parent=5 // pred_check_branch
        %1501 = sbr.rel (%p1499) target = $region80
      $region79: #{tpu_custom_call.1} parent=5 // pred_region
        %s1502 = ssub.s32 %s28, 2
        // Predicated region
        $region81: #{tpu_custom_call.1} parent=79 // pred_check
          %p1503 = pneg %p219
        $region82: #{tpu_custom_call.1} parent=79 // pred_check_branch
          %1505 = sbr.rel (%p1503) target = $region84
        $region83: #{tpu_custom_call.1} parent=79 // pred_region
          %s1506 = sand.u32 %s204, 1
          %s1507 = scalar_lea.sflag [#allocation4], %s1506
          %s1508 = sand.u32 %s204, 1
          %s1509 = smul.addr %s1508, 8
          %s1510 = scalar_lea.vmem [#allocation11], %s1509
          %1511 = dma.done %s1507, 128
        $region84: #{tpu_custom_call.1} parent=79 // pred_fallthru
          _
        // Predicated region
        $region85: #{tpu_custom_call.1} parent=79 // pred_check
          %p1512 = pneg %p245
        $region86: #{tpu_custom_call.1} parent=79 // pred_check_branch
          %1514 = sbr.rel (%p1512) target = $region88
        $region87: #{tpu_custom_call.1} parent=79 // pred_region
          %s1515 = sand.u32 %s230, 1
          %s1516 = scalar_lea.sflag [#allocation13], %s1515
          %s1517 = sand.u32 %s230, 1
          %s1518 = smul.addr %s1517, 32
          %s1519 = scalar_lea.vmem [#allocation12], %s1518
          %1520 = dma.done %s1516, 512
        $region88: #{tpu_custom_call.1} parent=79 // pred_fallthru
          _
      $region80: #{tpu_custom_call.1} parent=5 // pred_fallthru
        _
    $region6: #{tpu_custom_call.1} parent=1 // loop_footer
      %s32 = sadd.s32 1, %s28
    $region7: #{tpu_custom_call.1} parent=1 // loop_footer_branch
      %27 = sbr.rel target = $region3
    $region8: #{tpu_custom_call.1} parent=1 // loop_exit
      _
    %1521 = vsyncpa [#allocation3], 1
    %s1522 = scalar_lea.sflag [#allocation3], 1
    %1523 = vsyncpa %s1522, 1
    %1524 = vsyncpa [#allocation6], 1
    %s1525 = scalar_lea.sflag [#allocation6], 1
    %1526 = vsyncpa %s1525, 1
    %1527 = vsyncpa [#allocation9], 1
    %1528 = vsyncpa [#allocation4], 1
    %s1529 = scalar_lea.sflag [#allocation4], 1
    %1530 = vsyncpa %s1529, 1
    %1531 = vsyncpa [#allocation13], 1
    %s1532 = scalar_lea.sflag [#allocation13], 1
    %1533 = vsyncpa %s1532, 1

</llo_original>
